<compile_context>
chip_gen: v7x
topology: tpu7x:2x2x1
jax: 0.10.0
libtpu: 0.0.40
codegen_flags: <defaults>
</compile_context>

<pallas_src>
import numpy as np
import jax
import jax.numpy as jnp
from jax import lax
from jax.experimental import pallas as pl
from jax.experimental.pallas import tpu as pltpu

MACHINE_EPSILON = float(np.finfo(np.double).eps)
LOG_EPS = float(np.log(MACHINE_EPSILON))      # ~ -36.04
_PAD_COORD = 1e18                             # padded y rows: 1/(1+d) ~ 1e-36 ~ 0
_VMEM_LIMIT = 32 * 1024 * 1024                # portable to v7x's 64 MiB VMEM


def _round_up(n, m):
    return ((n + m - 1) // m) * m


def _pick_tile(n, desired):
    """Largest power-of-two multiple of 128 <= desired that divides n (n % 128 == 0)."""
    t = 128
    while t * 2 <= desired and n % (t * 2) == 0:
        t *= 2
    return t


# ----------------------------------------------------------------------------
# Kernel 1: pairwise squared euclidean distances (high-dim path, MXU)
#   D[i, j] = |x_i|^2 + |x_j|^2 - 2 <x_i, x_j>
# ----------------------------------------------------------------------------
def _pdist_kernel(xi_ref, xj_ref, si_ref, sj_ref, o_ref):
    # Contract dim 1 of both operands -> no explicit transpose of the xj tile.
    g = lax.dot_general(
        xi_ref[...], xj_ref[...],
        dimension_numbers=(((1,), (1,)), ((), ())),
        preferred_element_type=jnp.float32)
    # Row norms precomputed once outside and broadcast here: (tm,1)+(1,tn).
    o_ref[...] = si_ref[...] + sj_ref[...] - 2.0 * g


def pdist_pallas(x, *, tile_m=256, tile_n=512):
    x = x.astype(jnp.float32)
    n, d = x.shape
    n_pad = _round_up(n, 128)
    if n_pad != n:
        x = jnp.pad(x, ((0, n_pad - n), (0, 0)))        # zero rows, sliced away below
    tm = _pick_tile(n_pad, tile_m)
    tn = _pick_tile(n_pad, tile_n)
    norms = jnp.sum(x * x, axis=1)                      # computed once
    nc = norms[:, None]                                 # (Np, 1)
    nr = norms[None, :]                                 # (1, Np)
    out = pl.pallas_call(
        _pdist_kernel,
        out_shape=jax.ShapeDtypeStruct((n_pad, n_pad), jnp.float32),
        grid_spec=pltpu.PrefetchScalarGridSpec(
            num_scalar_prefetch=0,
            grid=(n_pad // tm, n_pad // tn),            # j innermost -> xi stays resident
            in_specs=[
                pl.BlockSpec((tm, d), lambda i, j: (i, 0)),
                pl.BlockSpec((tn, d), lambda i, j: (j, 0)),
                pl.BlockSpec((tm, 1), lambda i, j: (i, 0)),
                pl.BlockSpec((1, tn), lambda i, j: (0, j)),
            ],
            out_specs=pl.BlockSpec((tm, tn), lambda i, j: (i, j)),
        ),
        compiler_params=pltpu.CompilerParams(
            dimension_semantics=("parallel", "parallel"),
            vmem_limit_bytes=_VMEM_LIMIT),
    )(x, x, nc, nr)
    if n_pad != n:
        out = out[:n, :n]
    return out


# ----------------------------------------------------------------------------
# Low-dim (D=2) squared distances per tile, pure VPU broadcast difference.
# ----------------------------------------------------------------------------
def _tile_sqdist(yr, yct):
    # yr: (tm, D) rows, yct: (D, tn) columns (pre-transposed outside the kernel).
    acc = None
    for c in range(yr.shape[1]):              # D is tiny & static (2)
        diff = yr[:, c:c + 1] - yct[c:c + 1, :]
        sq = diff * diff
        acc = sq if acc is None else acc + sq
    return acc


# ----------------------------------------------------------------------------
# Kernel 2 (fused): in one pass over (i,j) tiles accumulate, per row,
#   num_acc  = sum_j 1/(1 + d_ij)                       (for the normalizer)
#   kl_acc   = sum_{j offdiag} P*log(P*(1+d))  (+ diag term P*log(P/eps))
#   p_acc    = sum_{j offdiag} P               (to be scaled by log(denom))
# P itself is built in-kernel from the raw scatter: symmetrize + /max_P +
# eps clamp + early exaggeration (scalar-prefetch constants).
# ----------------------------------------------------------------------------
def _fused_lowdim_kernel(scal_ref,                    # SMEM (2,): [1/max_P, exaggeration]
                         pa_ref, pb_ref,              # (tm,tn)@(i,j) and (tn,tm)@(j,i)
                         yr_ref, yct_ref,             # (tm,D), (D,tn)
                         num_out, kl_out, psum_out,   # (tm,1) each
                         num_acc, kl_acc, p_acc):     # (tm,tn) f32 scratch
    i = pl.program_id(0)
    j = pl.program_id(1)
    tm, tn = pa_ref.shape

    @pl.when(j == 0)
    def _():
        num_acc[...] = jnp.zeros_like(num_acc)
        kl_acc[...] = jnp.zeros_like(kl_acc)
        p_acc[...] = jnp.zeros_like(p_acc)

    one_plus_d = 1.0 + _tile_sqdist(yr_ref[...], yct_ref[...])

    # Student-t numerator partial sums (approx reciprocal -> EUP slot).
    num_acc[...] += pl.reciprocal(one_plus_d, approx=True)

    # In-kernel symmetrization (XLU transpose) + /max_P + eps clamp + exaggeration.
    p_raw = pa_ref[...] + jnp.transpose(pb_ref[...])
    p_scaled = p_raw * scal_ref[0]
    p = jnp.where(p_scaled > 0.0, p_scaled, MACHINE_EPSILON) * scal_ref[1]

    # Off-diagonal KL piece via the log identity (one transcendental / element):
    #   P*log(P/Q) = P*log(P*(1+d)) + P*log(denom); the log(denom) piece is
    #   added outside the kernel as log(denom) * sum_offdiag(P).
    kl_acc[...] += p * jnp.log(p * one_plus_d)
    p_acc[...] += p

    # Diagonal fix-up, only on the few tiles actually crossed by the diagonal.
    row0 = i * tm
    col0 = j * tn

    @pl.when(jnp.logical_and(row0 < col0 + tn, col0 < row0 + tm))
    def _():
        row_g = row0 + lax.broadcasted_iota(jnp.int32, (tm, tn), 0)
        col_g = col0 + lax.broadcasted_iota(jnp.int32, (tm, tn), 1)
        eye = row_g == col_g
        # Reference sets Q_diag = 0 -> clamped to eps, so the diagonal term is
        # P*log(P/eps) (d_ii == 0 exactly): swap out the off-diagonal-style
        # contribution by adding -log(eps)*P and removing P from the P-sum.
        kl_acc[...] += jnp.where(eye, (-LOG_EPS) * p, 0.0)
        p_acc[...] += jnp.where(eye, -p, 0.0)

    @pl.when(j == pl.num_programs(1) - 1)
    def _():
        num_out[...] = jnp.sum(num_acc[...], axis=1, keepdims=True)
        kl_out[...] = jnp.sum(kl_acc[...], axis=1, keepdims=True)
        psum_out[...] = jnp.sum(p_acc[...], axis=1, keepdims=True)


def tsne_kl_low_dim(p_sparse, y, inv_max_p, exaggeration, *, tile_m=256, tile_n=512):
    """KL(P || Q(y)) with Q, dist_y and P_sym never materialized in HBM."""
    n = p_sparse.shape[0]
    n_pad = _round_up(n, 128)
    pad = n_pad - n
    p_sparse = p_sparse.astype(jnp.float32)
    y = y.astype(jnp.float32)
    if pad:
        # Pad P with zeros and park padded points "at infinity": their
        # student-t terms underflow to ~0 and the exactly-known pad*pad block
        # of ones is subtracted from the normalizer below.  The eps-clamped
        # padded P entries contribute O(1e-10) to the KL (<< fp32 noise).
        p_sparse = jnp.pad(p_sparse, ((0, pad), (0, pad)))
        y = jnp.pad(y, ((0, pad), (0, 0)), constant_values=_PAD_COORD)
    d_low = y.shape[1]
    y_t = y.T                                  # (D, Np): columns lane-resident per tile
    tm = _pick_tile(n_pad, tile_m)
    tn = _pick_tile(n_pad, tile_n)
    grid = (n_pad // tm, n_pad // tn)
    scal = jnp.stack([jnp.asarray(inv_max_p, jnp.float32),
                      jnp.asarray(exaggeration, jnp.float32)])

    num_rows, kl_rows, p_rows = pl.pallas_call(
        _fused_lowdim_kernel,
        out_shape=(jax.ShapeDtypeStruct((n_pad, 1), jnp.float32),
                   jax.ShapeDtypeStruct((n_pad, 1), jnp.float32),
                   jax.ShapeDtypeStruct((n_pad, 1), jnp.float32)),
        grid_spec=pltpu.PrefetchScalarGridSpec(
            num_scalar_prefetch=1,             # [1/max_P, exaggeration] in SMEM
            grid=grid,
            in_specs=[
                pl.BlockSpec((tm, tn), lambda i, j, s: (i, j)),
                pl.BlockSpec((tn, tm), lambda i, j, s: (j, i)),
                pl.BlockSpec((tm, d_low), lambda i, j, s: (i, 0)),
                pl.BlockSpec((d_low, tn), lambda i, j, s: (0, j)),
            ],
            out_specs=[
                pl.BlockSpec((tm, 1), lambda i, j, s: (i, 0)),
                pl.BlockSpec((tm, 1), lambda i, j, s: (i, 0)),
                pl.BlockSpec((tm, 1), lambda i, j, s: (i, 0)),
            ],
            scratch_shapes=[pltpu.VMEM((tm, tn), jnp.float32)] * 3,
        ),
        compiler_params=pltpu.CompilerParams(
            dimension_semantics=("parallel", "arbitrary"),
            vmem_limit_bytes=_VMEM_LIMIT),
        # TODO(synk): if profiling shows the P-tile DMA exposed (likely v7x),
        # add pipeline_mode=pl.Buffered(3) on the two P BlockSpecs.
    )(scal, p_sparse, p_sparse, y, y_t)

    # denominator = sum over real off-diagonal pairs of 1/(1+d)
    #   = total sum - n (real diagonal ones) - pad^2 (padded block of ones).
    denom = jnp.sum(num_rows) - jnp.float32(n) - jnp.float32(pad * pad)
    return jnp.sum(kl_rows) + jnp.log(denom) * jnp.sum(p_rows)


# ----------------------------------------------------------------------------
# TSNELoss module (Pallas-backed forward)
# ----------------------------------------------------------------------------
class TSNELossPallas:
    def __init__(self, N, perplexity=30, early_exaggeration_fac=1.0):
        self.N = N
        self.perplexity = perplexity
        self.exaggeration_fac = float(early_exaggeration_fac)
        # TODO(synk): reference keeps beta in float64; TPU Pallas path is float32.
        self.beta = jnp.zeros((N,), jnp.float32)

    def _high_dim_sparse(self, x, beta):
        """Raw (un-symmetrized, un-normalized) sparse neighbor probabilities + 1/max_P."""
        beta = jnp.where(beta == 0.0, MACHINE_EPSILON, beta)
        n = x.shape[0]
        k = 3 * self.perplexity + 2
        dist_sq = pdist_pallas(x)                       # Pallas (MXU hot path)
        # TODO(synk): k-NN selection + sparse scatter stay as XLA glue (no clean
        # Pallas sort/scatter); top_k may break ties differently than torch.sort.
        neg_d, idx = lax.top_k(-dist_sq, k)             # ascending distance
        nn_idx = idx[:, 1:k]                            # drop self
        d_nn = -neg_d[:, 1:k]                           # reuse top_k values (no gather)
        numer = jnp.exp(-d_nn * beta[:, None])
        p_rows = numer / jnp.sum(numer, axis=1, keepdims=True)
        rows = jnp.broadcast_to(jnp.arange(n)[:, None], nn_idx.shape)
        p_sparse = jnp.zeros((n, n), jnp.float32).at[
            rows.reshape(-1), nn_idx.reshape(-1)
        ].add(p_rows.reshape(-1))
        max_p = jnp.maximum(2.0 * jnp.sum(p_rows), MACHINE_EPSILON)
        return p_sparse, 1.0 / max_p

    def __call__(self, x, y, indices=None):
        if indices is None:
            indices = jnp.arange(self.N)
        elif indices.shape[0] < 3 * self.perplexity + 2:
            raise ValueError(
                "Number of provided samples ({}) is too small for nearest "
                "neighbor estimation with given perplexity. Please use at "
                "least {}.".format(indices.shape[0], 3 * self.perplexity + 2))
        p_sparse, inv_max_p = self._high_dim_sparse(x, self.beta[indices])
        # symmetrization, /max_P, eps clamp and * exaggeration_fac are all
        # fused into the low-dim Pallas kernel.
        return tsne_kl_low_dim(p_sparse, y, inv_max_p, self.exaggeration_fac)


# ----------------------------------------------------------------------------
# Pure-JAX reference (mirrors the PyTorch forward) for a sanity check
# ----------------------------------------------------------------------------
def _reference_loss(x, y, beta, perplexity, exaggeration_fac):
    def pdist_ref(v):
        g = jnp.dot(v, v.T)
        s = jnp.sum(v * v, axis=1)
        return -2.0 * g + s[None, :] + s[:, None]

    n = x.shape[0]
    k = 3 * perplexity + 2
    beta = jnp.where(beta == 0.0, MACHINE_EPSILON, beta)
    dist_x = pdist_ref(x)
    order = jnp.argsort(dist_x, axis=1)
    nn_idx = order[:, 1:k]
    d_nn = jnp.take_along_axis(dist_x, nn_idx, axis=1)
    numer = jnp.exp(-d_nn * beta[:, None])
    p_rows = numer / jnp.sum(numer, axis=1, keepdims=True)
    rows = jnp.broadcast_to(jnp.arange(n)[:, None], nn_idx.shape)
    p_sparse = jnp.zeros((n, n), jnp.float32).at[
        rows.reshape(-1), nn_idx.reshape(-1)].add(p_rows.reshape(-1))
    p_sym = p_sparse + p_sparse.T
    P = p_sym / jnp.maximum(2.0 * jnp.sum(p_rows), MACHINE_EPSILON)
    P = jnp.where(P > 0.0, P, MACHINE_EPSILON) * exaggeration_fac

    dist_y = pdist_ref(y)
    num = 1.0 / (1.0 + dist_y)
    row = jnp.arange(n)[:, None]
    col = jnp.arange(n)[None, :]
    denom = 2.0 * jnp.sum(jnp.where(col > row, num, 0.0))
    Q = num / denom
    Q = jnp.where(row == col, 0.0, Q)
    Q = jnp.where(Q > 0.0, Q, MACHINE_EPSILON)

    safe_P = jnp.where(P > 0.0, P, MACHINE_EPSILON)
    return jnp.sum(P * jnp.log(safe_P / Q))


if __name__ == "__main__":
    base_key = jax.random.PRNGKey(0)

    def run_case(case_id, n, d_high, perplexity, exaggeration):
        key = jax.random.fold_in(base_key, case_id)
        kx, ky = jax.random.split(key)
        x = jax.random.normal(kx, (n, d_high), dtype=jnp.float32)
        y = 0.1 * jax.random.normal(ky, (n, 2), dtype=jnp.float32)
        mod = TSNELossPallas(n, perplexity=perplexity,
                             early_exaggeration_fac=exaggeration)
        loss_fn = jax.jit(lambda xx, yy: mod(xx, yy))
        loss = jax.block_until_ready(loss_fn(x, y))
        ref = jax.block_until_ready(
            _reference_loss(x, y, mod.beta, perplexity, exaggeration))
        assert np.isfinite(float(loss)), "loss is not finite"
        np.testing.assert_allclose(float(loss), float(ref), rtol=5e-3, atol=5e-4)

    run_case(0, 128, 32, 5, 1.0)    # tile-aligned N
    run_case(1, 200, 32, 5, 4.0)    # ragged N -> padded to 256 inside the kernels
    print("KERNEL_OK")
</pallas_src>

<mosaic_0001>
module attributes {stable_mosaic.version = 11 : i64} {
  func.func private @main(%arg0: i32) attributes {dimension_semantics = [#tpu.dimension_semantics<core_parallel>], iteration_bounds = array<i64: 2>, tpu.core_type = #tpu.core_type<sc_scalar_subcore>, window_params = []} {
    return
  }
}

module attributes {stable_mosaic.version = 11 : i64} {
  func.func private @main(%arg0: i32) attributes {dimension_semantics = [#tpu.dimension_semantics<core_parallel>], iteration_bounds = array<i64: 2>, tpu.core_type = #tpu.core_type<sc_scalar_subcore>, window_params = []} {
    return
  }
}

module attributes {stable_mosaic.version = 11 : i64} {
  func.func @_pdist_kernel(%arg0: i32, %arg1: i32, %arg2: memref<128x32xf32, #tpu.memory_space<vmem>>, %arg3: memref<128x32xf32, #tpu.memory_space<vmem>>, %arg4: memref<128x1xf32, #tpu.memory_space<vmem>>, %arg5: memref<1x128xf32, #tpu.memory_space<vmem>>, %arg6: memref<128x128xf32, #tpu.memory_space<vmem>>) attributes {dimension_semantics = [#tpu.dimension_semantics<parallel>, #tpu.dimension_semantics<parallel>], iteration_bounds = array<i64: 1, 1>, scalar_prefetch = 0 : i64, scratch_operands = 0 : i64, tpu.core_type = #tpu.core_type<tc>, window_params = [{transform_indices = @transform_0, window_bounds = array<i64: 128, 32>}, {transform_indices = @transform_1, window_bounds = array<i64: 128, 32>}, {transform_indices = @transform_2, window_bounds = array<i64: 128, 1>}, {transform_indices = @transform_3, window_bounds = array<i64: 1, 128>}, {transform_indices = @transform_4, window_bounds = array<i64: 128, 128>}]} {
    %c0 = arith.constant 0 : index
    %c0_0 = arith.constant 0 : index
    %0 = vector.load %arg2[%c0, %c0_0] : memref<128x32xf32, #tpu.memory_space<vmem>>, vector<128x32xf32>
    %c0_1 = arith.constant 0 : index
    %c0_2 = arith.constant 0 : index
    %1 = vector.load %arg3[%c0_1, %c0_2] : memref<128x32xf32, #tpu.memory_space<vmem>>, vector<128x32xf32>
    %cst = arith.constant dense<0.000000e+00> : vector<128x128xf32>
    %2 = tpu.matmul %0, %1, %cst {dimension_numbers = #tpu.dot_dimension_numbers<[1], [1], [0], [0], [0, 0, 1, 0], [], []>} : vector<128x32xf32>, vector<128x32xf32>, vector<128x128xf32> -> vector<128x128xf32>
    %c0_3 = arith.constant 0 : index
    %c0_4 = arith.constant 0 : index
    %3 = vector.load %arg4[%c0_3, %c0_4] : memref<128x1xf32, #tpu.memory_space<vmem>>, vector<128x1xf32>
    %c0_5 = arith.constant 0 : index
    %c0_6 = arith.constant 0 : index
    %4 = vector.load %arg5[%c0_5, %c0_6] : memref<1x128xf32, #tpu.memory_space<vmem>>, vector<1x128xf32>
    %5 = vector.broadcast %3 : vector<128x1xf32> to vector<128x128xf32>
    %6 = vector.broadcast %4 : vector<1x128xf32> to vector<128x128xf32>
    %7 = arith.addf %5, %6 : vector<128x128xf32>
    %cst_7 = arith.constant 2.000000e+00 : f32
    %8 = vector.broadcast %cst_7 : f32 to vector<128x128xf32>
    %9 = arith.mulf %8, %2 : vector<128x128xf32>
    %10 = arith.subf %7, %9 : vector<128x128xf32>
    %c0_8 = arith.constant 0 : index
    %c0_9 = arith.constant 0 : index
    %11 = vector.load %arg6[%c0_8, %c0_9] : memref<128x128xf32, #tpu.memory_space<vmem>>, vector<128x128xf32>
    tpu.vector_store %arg6[%c0_8, %c0_9], %10 {strides = array<i32>} : memref<128x128xf32, #tpu.memory_space<vmem>>, vector<128x128xf32>,
    return
  }
  func.func @transform_0(%arg0: i32, %arg1: i32) -> (i32, i32) {
    %c0_i32 = arith.constant 0 : i32
    %c0_i32_0 = arith.constant 0 : i32
    return %arg0, %c0_i32 : i32, i32
  }
  func.func @transform_1(%arg0: i32, %arg1: i32) -> (i32, i32) {
    %c0_i32 = arith.constant 0 : i32
    %c0_i32_0 = arith.constant 0 : i32
    return %arg1, %c0_i32 : i32, i32
  }
  func.func @transform_2(%arg0: i32, %arg1: i32) -> (i32, i32) {
    %c0_i32 = arith.constant 0 : i32
    %c0_i32_0 = arith.constant 0 : i32
    return %arg0, %c0_i32 : i32, i32
  }
  func.func @transform_3(%arg0: i32, %arg1: i32) -> (i32, i32) {
    %c0_i32 = arith.constant 0 : i32
    %c0_i32_0 = arith.constant 0 : i32
    return %c0_i32, %arg1 : i32, i32
  }
  func.func @transform_4(%arg0: i32, %arg1: i32) -> (i32, i32) {
    %c0_i32 = arith.constant 0 : i32
    return %arg0, %arg1 : i32, i32
  }
}

module attributes {stable_mosaic.version = 11 : i64} {
  func.func @_fused_lowdim_kernel(%arg0: i32, %arg1: i32, %arg2: memref<2xf32, #tpu.memory_space<smem>>, %arg3: memref<128x128xf32, #tpu.memory_space<vmem>>, %arg4: memref<128x128xf32, #tpu.memory_space<vmem>>, %arg5: memref<128x2xf32, #tpu.memory_space<vmem>>, %arg6: memref<2x128xf32, #tpu.memory_space<vmem>>, %arg7: memref<128x1xf32, #tpu.memory_space<vmem>>, %arg8: memref<128x1xf32, #tpu.memory_space<vmem>>, %arg9: memref<128x1xf32, #tpu.memory_space<vmem>>, %arg10: memref<128x128xf32, #tpu.memory_space<vmem>>, %arg11: memref<128x128xf32, #tpu.memory_space<vmem>>, %arg12: memref<128x128xf32, #tpu.memory_space<vmem>>) attributes {dimension_semantics = [#tpu.dimension_semantics<parallel>, #tpu.dimension_semantics<arbitrary>], iteration_bounds = array<i64: 1, 1>, scalar_prefetch = 1 : i64, scratch_operands = 3 : i64, tpu.core_type = #tpu.core_type<tc>, window_params = [{transform_indices = @transform_0, window_bounds = array<i64: 128, 128>}, {transform_indices = @transform_1, window_bounds = array<i64: 128, 128>}, {transform_indices = @transform_2, window_bounds = array<i64: 128, 2>}, {transform_indices = @transform_3, window_bounds = array<i64: 2, 128>}, {transform_indices = @transform_4, window_bounds = array<i64: 128, 1>}, {transform_indices = @transform_5, window_bounds = array<i64: 128, 1>}, {transform_indices = @transform_6, window_bounds = array<i64: 128, 1>}]} {
    %c0_i32 = arith.constant 0 : i32
    %0 = arith.cmpi eq, %arg1, %c0_i32 : i32
    %1 = arith.extui %0 : i1 to i32
    %c0_i32_0 = arith.constant 0 : i32
    %2 = arith.cmpi ne, %1, %c0_i32_0 : i32
    scf.if %2 {
      %cst_29 = arith.constant 0.000000e+00 : f32
      %59 = vector.broadcast %cst_29 : f32 to vector<128x128xf32>
      %c0_30 = arith.constant 0 : index
      %c0_31 = arith.constant 0 : index
      %60 = vector.load %arg10[%c0_30, %c0_31] : memref<128x128xf32, #tpu.memory_space<vmem>>, vector<128x128xf32>
      tpu.vector_store %arg10[%c0_30, %c0_31], %59 {strides = array<i32>} : memref<128x128xf32, #tpu.memory_space<vmem>>, vector<128x128xf32>,
      %cst_32 = arith.constant 0.000000e+00 : f32
      %61 = vector.broadcast %cst_32 : f32 to vector<128x128xf32>
      %c0_33 = arith.constant 0 : index
      %c0_34 = arith.constant 0 : index
      %62 = vector.load %arg11[%c0_33, %c0_34] : memref<128x128xf32, #tpu.memory_space<vmem>>, vector<128x128xf32>
      tpu.vector_store %arg11[%c0_33, %c0_34], %61 {strides = array<i32>} : memref<128x128xf32, #tpu.memory_space<vmem>>, vector<128x128xf32>,
      %cst_35 = arith.constant 0.000000e+00 : f32
      %63 = vector.broadcast %cst_35 : f32 to vector<128x128xf32>
      %c0_36 = arith.constant 0 : index
      %c0_37 = arith.constant 0 : index
      %64 = vector.load %arg12[%c0_36, %c0_37] : memref<128x128xf32, #tpu.memory_space<vmem>>, vector<128x128xf32>
      tpu.vector_store %arg12[%c0_36, %c0_37], %63 {strides = array<i32>} : memref<128x128xf32, #tpu.memory_space<vmem>>, vector<128x128xf32>,
    } else {
    }
    %c0 = arith.constant 0 : index
    %c0_1 = arith.constant 0 : index
    %3 = vector.load %arg5[%c0, %c0_1] : memref<128x2xf32, #tpu.memory_space<vmem>>, vector<128x2xf32>
    %c0_2 = arith.constant 0 : index
    %c0_3 = arith.constant 0 : index
    %4 = vector.load %arg6[%c0_2, %c0_3] : memref<2x128xf32, #tpu.memory_space<vmem>>, vector<2x128xf32>
    %5 = vector.extract_strided_slice %3 {offsets = [0, 0], sizes = [128, 1], strides = [1, 1]} : vector<128x2xf32> to vector<128x1xf32>
    %6 = vector.extract_strided_slice %4 {offsets = [0, 0], sizes = [1, 128], strides = [1, 1]} : vector<2x128xf32> to vector<1x128xf32>
    %7 = vector.broadcast %5 : vector<128x1xf32> to vector<128x128xf32>
    %8 = vector.broadcast %6 : vector<1x128xf32> to vector<128x128xf32>
    %9 = arith.subf %7, %8 : vector<128x128xf32>
    %10 = arith.mulf %9, %9 : vector<128x128xf32>
    %11 = vector.extract_strided_slice %3 {offsets = [0, 1], sizes = [128, 1], strides = [1, 1]} : vector<128x2xf32> to vector<128x1xf32>
    %12 = vector.extract_strided_slice %4 {offsets = [1, 0], sizes = [1, 128], strides = [1, 1]} : vector<2x128xf32> to vector<1x128xf32>
    %13 = vector.broadcast %11 : vector<128x1xf32> to vector<128x128xf32>
    %14 = vector.broadcast %12 : vector<1x128xf32> to vector<128x128xf32>
    %15 = arith.subf %13, %14 : vector<128x128xf32>
    %16 = arith.mulf %15, %15 : vector<128x128xf32>
    %17 = arith.addf %10, %16 : vector<128x128xf32>
    %cst = arith.constant 1.000000e+00 : f32
    %18 = vector.broadcast %cst : f32 to vector<128x128xf32>
    %19 = arith.addf %18, %17 : vector<128x128xf32>
    %c0_4 = arith.constant 0 : index
    %c0_5 = arith.constant 0 : index
    %20 = vector.load %arg10[%c0_4, %c0_5] : memref<128x128xf32, #tpu.memory_space<vmem>>, vector<128x128xf32>
    %21 = tpu.reciprocal %19 {approx = true} : vector<128x128xf32> -> vector<128x128xf32>
    %22 = arith.addf %20, %21 : vector<128x128xf32>
    %c0_6 = arith.constant 0 : index
    %c0_7 = arith.constant 0 : index
    %23 = vector.load %arg10[%c0_6, %c0_7] : memref<128x128xf32, #tpu.memory_space<vmem>>, vector<128x128xf32>
    tpu.vector_store %arg10[%c0_6, %c0_7], %22 {strides = array<i32>} : memref<128x128xf32, #tpu.memory_space<vmem>>, vector<128x128xf32>,
    %c0_8 = arith.constant 0 : index
    %c0_9 = arith.constant 0 : index
    %24 = vector.load %arg3[%c0_8, %c0_9] : memref<128x128xf32, #tpu.memory_space<vmem>>, vector<128x128xf32>
    %c0_10 = arith.constant 0 : index
    %c0_11 = arith.constant 0 : index
    %25 = vector.load %arg4[%c0_10, %c0_11] : memref<128x128xf32, #tpu.memory_space<vmem>>, vector<128x128xf32>
    %26 = tpu.transpose %25, [1, 0] : vector<128x128xf32> -> vector<128x128xf32>
    %27 = arith.addf %24, %26 : vector<128x128xf32>
    %c0_12 = arith.constant 0 : index
    %28 = memref.load %arg2[%c0_12] : memref<2xf32, #tpu.memory_space<smem>>
    %29 = vector.broadcast %28 : f32 to vector<128x128xf32>
    %30 = arith.mulf %27, %29 : vector<128x128xf32>
    %cst_13 = arith.constant 0.000000e+00 : f32
    %31 = vector.broadcast %cst_13 : f32 to vector<128x128xf32>
    %32 = arith.cmpf ogt, %30, %31 : vector<128x128xf32>
    %cst_14 = arith.constant 2.22044605E-16 : f32
    %33 = vector.broadcast %cst_14 : f32 to vector<128x128xf32>
    %34 = arith.select %32, %30, %33 : vector<128x128xi1>, vector<128x128xf32>
    %c1 = arith.constant 1 : index
    %35 = memref.load %arg2[%c1] : memref<2xf32, #tpu.memory_space<smem>>
    %36 = vector.broadcast %35 : f32 to vector<128x128xf32>
    %37 = arith.mulf %34, %36 : vector<128x128xf32>
    %c0_15 = arith.constant 0 : index
    %c0_16 = arith.constant 0 : index
    %38 = vector.load %arg11[%c0_15, %c0_16] : memref<128x128xf32, #tpu.memory_space<vmem>>, vector<128x128xf32>
    %39 = arith.mulf %37, %19 : vector<128x128xf32>
    %40 = math.log %39 : vector<128x128xf32>
    %41 = arith.mulf %37, %40 : vector<128x128xf32>
    %42 = arith.addf %38, %41 : vector<128x128xf32>
    %c0_17 = arith.constant 0 : index
    %c0_18 = arith.constant 0 : index
    %43 = vector.load %arg11[%c0_17, %c0_18] : memref<128x128xf32, #tpu.memory_space<vmem>>, vector<128x128xf32>
    tpu.vector_store %arg11[%c0_17, %c0_18], %42 {strides = array<i32>} : memref<128x128xf32, #tpu.memory_space<vmem>>, vector<128x128xf32>,
    %c0_19 = arith.constant 0 : index
    %c0_20 = arith.constant 0 : index
    %44 = vector.load %arg12[%c0_19, %c0_20] : memref<128x128xf32, #tpu.memory_space<vmem>>, vector<128x128xf32>
    %45 = arith.addf %44, %37 : vector<128x128xf32>
    %c0_21 = arith.constant 0 : index
    %c0_22 = arith.constant 0 : index
    %46 = vector.load %arg12[%c0_21, %c0_22] : memref<128x128xf32, #tpu.memory_space<vmem>>, vector<128x128xf32>
    tpu.vector_store %arg12[%c0_21, %c0_22], %45 {strides = array<i32>} : memref<128x128xf32, #tpu.memory_space<vmem>>, vector<128x128xf32>,
    %c128_i32 = arith.constant 128 : i32
    %47 = arith.muli %arg0, %c128_i32 : i32
    %c128_i32_23 = arith.constant 128 : i32
    %48 = arith.muli %arg1, %c128_i32_23 : i32
    %c128_i32_24 = arith.constant 128 : i32
    %49 = arith.addi %48, %c128_i32_24 : i32
    %50 = arith.cmpi slt, %47, %49 : i32
    %c128_i32_25 = arith.constant 128 : i32
    %51 = arith.addi %47, %c128_i32_25 : i32
    %52 = arith.cmpi slt, %48, %51 : i32
    %53 = arith.andi %50, %52 : i1
    %54 = arith.extui %53 : i1 to i32
    %c0_i32_26 = arith.constant 0 : i32
    %55 = arith.cmpi ne, %54, %c0_i32_26 : i32
    scf.if %55 {
      %59 = tpu.iota {dimensions = array<i32: 0>} : vector<128x128xi32>
      %60 = vector.broadcast %47 : i32 to vector<128x128xi32>
      %61 = arith.addi %60, %59 : vector<128x128xi32>
      %62 = tpu.iota {dimensions = array<i32: 1>} : vector<128x128xi32>
      %63 = vector.broadcast %48 : i32 to vector<128x128xi32>
      %64 = arith.addi %63, %62 : vector<128x128xi32>
      %65 = arith.cmpi eq, %61, %64 : vector<128x128xi32>
      %c0_29 = arith.constant 0 : index
      %c0_30 = arith.constant 0 : index
      %66 = vector.load %arg11[%c0_29, %c0_30] : memref<128x128xf32, #tpu.memory_space<vmem>>, vector<128x128xf32>
      %cst_31 = arith.constant 36.0436516 : f32
      %67 = vector.broadcast %cst_31 : f32 to vector<128x128xf32>
      %68 = arith.mulf %67, %37 : vector<128x128xf32>
      %cst_32 = arith.constant 0.000000e+00 : f32
      %69 = vector.broadcast %cst_32 : f32 to vector<128x128xf32>
      %70 = arith.select %65, %68, %69 : vector<128x128xi1>, vector<128x128xf32>
      %71 = arith.addf %66, %70 : vector<128x128xf32>
      %c0_33 = arith.constant 0 : index
      %c0_34 = arith.constant 0 : index
      %72 = vector.load %arg11[%c0_33, %c0_34] : memref<128x128xf32, #tpu.memory_space<vmem>>, vector<128x128xf32>
      tpu.vector_store %arg11[%c0_33, %c0_34], %71 {strides = array<i32>} : memref<128x128xf32, #tpu.memory_space<vmem>>, vector<128x128xf32>,
      %c0_35 = arith.constant 0 : index
      %c0_36 = arith.constant 0 : index
      %73 = vector.load %arg12[%c0_35, %c0_36] : memref<128x128xf32, #tpu.memory_space<vmem>>, vector<128x128xf32>
      %cst_37 = arith.constant 0.000000e+00 : f32
      %74 = vector.broadcast %cst_37 : f32 to vector<128x128xf32>
      %75 = arith.subf %74, %37 : vector<128x128xf32>
      %cst_38 = arith.constant 0.000000e+00 : f32
      %76 = vector.broadcast %cst_38 : f32 to vector<128x128xf32>
      %77 = arith.select %65, %75, %76 : vector<128x128xi1>, vector<128x128xf32>
      %78 = arith.addf %73, %77 : vector<128x128xf32>
      %c0_39 = arith.constant 0 : index
      %c0_40 = arith.constant 0 : index
      %79 = vector.load %arg12[%c0_39, %c0_40] : memref<128x128xf32, #tpu.memory_space<vmem>>, vector<128x128xf32>
      tpu.vector_store %arg12[%c0_39, %c0_40], %78 {strides = array<i32>} : memref<128x128xf32, #tpu.memory_space<vmem>>, vector<128x128xf32>,
    } else {
    }
    %c0_i32_27 = arith.constant 0 : i32
    %56 = arith.cmpi eq, %arg1, %c0_i32_27 : i32
    %57 = arith.extui %56 : i1 to i32
    %c0_i32_28 = arith.constant 0 : i32
    %58 = arith.cmpi ne, %57, %c0_i32_28 : i32
    scf.if %58 {
      %c0_29 = arith.constant 0 : index
      %c0_30 = arith.constant 0 : index
      %59 = vector.load %arg10[%c0_29, %c0_30] : memref<128x128xf32, #tpu.memory_space<vmem>>, vector<128x128xf32>
      %cst_31 = arith.constant dense<0.000000e+00> : vector<128xf32>
      %60 = vector.multi_reduction <add>, %59, %cst_31 [1] : vector<128x128xf32> to vector<128xf32>
      %61 = vector.shape_cast %60 : vector<128xf32> to vector<128x1xf32>
      %c0_32 = arith.constant 0 : index
      %c0_33 = arith.constant 0 : index
      %62 = vector.load %arg7[%c0_32, %c0_33] : memref<128x1xf32, #tpu.memory_space<vmem>>, vector<128x1xf32>
      tpu.vector_store %arg7[%c0_32, %c0_33], %61 {strides = array<i32>} : memref<128x1xf32, #tpu.memory_space<vmem>>, vector<128x1xf32>,
      %c0_34 = arith.constant 0 : index
      %c0_35 = arith.constant 0 : index
      %63 = vector.load %arg11[%c0_34, %c0_35] : memref<128x128xf32, #tpu.memory_space<vmem>>, vector<128x128xf32>
      %cst_36 = arith.constant dense<0.000000e+00> : vector<128xf32>
      %64 = vector.multi_reduction <add>, %63, %cst_36 [1] : vector<128x128xf32> to vector<128xf32>
      %65 = vector.shape_cast %64 : vector<128xf32> to vector<128x1xf32>
      %c0_37 = arith.constant 0 : index
      %c0_38 = arith.constant 0 : index
      %66 = vector.load %arg8[%c0_37, %c0_38] : memref<128x1xf32, #tpu.memory_space<vmem>>, vector<128x1xf32>
      tpu.vector_store %arg8[%c0_37, %c0_38], %65 {strides = array<i32>} : memref<128x1xf32, #tpu.memory_space<vmem>>, vector<128x1xf32>,
      %c0_39 = arith.constant 0 : index
      %c0_40 = arith.constant 0 : index
      %67 = vector.load %arg12[%c0_39, %c0_40] : memref<128x128xf32, #tpu.memory_space<vmem>>, vector<128x128xf32>
      %cst_41 = arith.constant dense<0.000000e+00> : vector<128xf32>
      %68 = vector.multi_reduction <add>, %67, %cst_41 [1] : vector<128x128xf32> to vector<128xf32>
      %69 = vector.shape_cast %68 : vector<128xf32> to vector<128x1xf32>
      %c0_42 = arith.constant 0 : index
      %c0_43 = arith.constant 0 : index
      %70 = vector.load %arg9[%c0_42, %c0_43] : memref<128x1xf32, #tpu.memory_space<vmem>>, vector<128x1xf32>
      tpu.vector_store %arg9[%c0_42, %c0_43], %69 {strides = array<i32>} : memref<128x1xf32, #tpu.memory_space<vmem>>, vector<128x1xf32>,
    } else {
    }
    return
  }
  func.func @transform_0(%arg0: i32, %arg1: i32, %arg2: memref<2xf32, #tpu.memory_space<smem>>) -> (i32, i32) {
    %c0_i32 = arith.constant 0 : i32
    return %arg0, %arg1 : i32, i32
  }
  func.func @transform_1(%arg0: i32, %arg1: i32, %arg2: memref<2xf32, #tpu.memory_space<smem>>) -> (i32, i32) {
    %c0_i32 = arith.constant 0 : i32
    return %arg1, %arg0 : i32, i32
  }
  func.func @transform_2(%arg0: i32, %arg1: i32, %arg2: memref<2xf32, #tpu.memory_space<smem>>) -> (i32, i32) {
    %c0_i32 = arith.constant 0 : i32
    %c0_i32_0 = arith.constant 0 : i32
    return %arg0, %c0_i32 : i32, i32
  }
  func.func @transform_3(%arg0: i32, %arg1: i32, %arg2: memref<2xf32, #tpu.memory_space<smem>>) -> (i32, i32) {
    %c0_i32 = arith.constant 0 : i32
    %c0_i32_0 = arith.constant 0 : i32
    return %c0_i32, %arg1 : i32, i32
  }
  func.func @transform_4(%arg0: i32, %arg1: i32, %arg2: memref<2xf32, #tpu.memory_space<smem>>) -> (i32, i32) {
    %c0_i32 = arith.constant 0 : i32
    %c0_i32_0 = arith.constant 0 : i32
    return %arg0, %c0_i32 : i32, i32
  }
  func.func @transform_5(%arg0: i32, %arg1: i32, %arg2: memref<2xf32, #tpu.memory_space<smem>>) -> (i32, i32) {
    %c0_i32 = arith.constant 0 : i32
    %c0_i32_0 = arith.constant 0 : i32
    return %arg0, %c0_i32 : i32, i32
  }
  func.func @transform_6(%arg0: i32, %arg1: i32, %arg2: memref<2xf32, #tpu.memory_space<smem>>) -> (i32, i32) {
    %c0_i32 = arith.constant 0 : i32
    %c0_i32_0 = arith.constant 0 : i32
    return %arg0, %c0_i32 : i32, i32
  }
}

</mosaic_0001>

<llo_original>
// kernel: neg.3
$region0: #{neg.3}
  #allocation0 [shape = 's32[1]{0}', space=sflag, size = 0x4, scoped, tag = 'scoped memory for neg.3']
  %s0 = inlined_call_operand.vmem [shape: f32[128,128], index: 0, kind: input, shape index: {}]
  %s1 = inlined_call_operand.vmem [shape: f32[128,128], index: 1, kind: output, shape index: {}]
  %v2 = vld [vmem:[%s0] sm:$0xff]
  %3 = xla_tuple %v2
  %4 = xla_tuple %3
  %v5 = vxor.u32 %v2, 2147483648
  %6 = xla_tuple %v5
  %7 = vst [vmem:[%s1] sm:$0xff] %v5
  %s8 = scalar_lea.vmem %s0, 8
  %v9 = vld [vmem:[%s8] sm:$0xff]
  %10 = xla_tuple %v9
  %11 = xla_tuple %10
  %v12 = vxor.u32 %v9, 2147483648
  %13 = xla_tuple %v12
  %s14 = scalar_lea.vmem %s1, 8
  %15 = vst [vmem:[%s14] sm:$0xff] %v12
  %s16 = scalar_lea.vmem %s0, 16
  %v17 = vld [vmem:[%s16] sm:$0xff]
  %18 = xla_tuple %v17
  %19 = xla_tuple %18
  %v20 = vxor.u32 %v17, 2147483648
  %21 = xla_tuple %v20
  %s22 = scalar_lea.vmem %s1, 16
  %23 = vst [vmem:[%s22] sm:$0xff] %v20
  %s24 = scalar_lea.vmem %s0, 24
  %v25 = vld [vmem:[%s24] sm:$0xff]
  %26 = xla_tuple %v25
  %27 = xla_tuple %26
  %v28 = vxor.u32 %v25, 2147483648
  %29 = xla_tuple %v28
  %s30 = scalar_lea.vmem %s1, 24
  %31 = vst [vmem:[%s30] sm:$0xff] %v28
  %s32 = scalar_lea.vmem %s0, 32
  %v33 = vld [vmem:[%s32] sm:$0xff]
  %34 = xla_tuple %v33
  %35 = xla_tuple %34
  %v36 = vxor.u32 %v33, 2147483648
  %37 = xla_tuple %v36
  %s38 = scalar_lea.vmem %s1, 32
  %39 = vst [vmem:[%s38] sm:$0xff] %v36
  %s40 = scalar_lea.vmem %s0, 40
  %v41 = vld [vmem:[%s40] sm:$0xff]
  %42 = xla_tuple %v41
  %43 = xla_tuple %42
  %v44 = vxor.u32 %v41, 2147483648
  %45 = xla_tuple %v44
  %s46 = scalar_lea.vmem %s1, 40
  %47 = vst [vmem:[%s46] sm:$0xff] %v44
  %s48 = scalar_lea.vmem %s0, 48
  %v49 = vld [vmem:[%s48] sm:$0xff]
  %50 = xla_tuple %v49
  %51 = xla_tuple %50
  %v52 = vxor.u32 %v49, 2147483648
  %53 = xla_tuple %v52
  %s54 = scalar_lea.vmem %s1, 48
  %55 = vst [vmem:[%s54] sm:$0xff] %v52
  %s56 = scalar_lea.vmem %s0, 56
  %v57 = vld [vmem:[%s56] sm:$0xff]
  %58 = xla_tuple %v57
  %59 = xla_tuple %58
  %v60 = vxor.u32 %v57, 2147483648
  %61 = xla_tuple %v60
  %s62 = scalar_lea.vmem %s1, 56
  %63 = vst [vmem:[%s62] sm:$0xff] %v60
  %s64 = scalar_lea.vmem %s0, 64
  %v65 = vld [vmem:[%s64] sm:$0xff]
  %66 = xla_tuple %v65
  %67 = xla_tuple %66
  %v68 = vxor.u32 %v65, 2147483648
  %69 = xla_tuple %v68
  %s70 = scalar_lea.vmem %s1, 64
  %71 = vst [vmem:[%s70] sm:$0xff] %v68
  %s72 = scalar_lea.vmem %s0, 72
  %v73 = vld [vmem:[%s72] sm:$0xff]
  %74 = xla_tuple %v73
  %75 = xla_tuple %74
  %v76 = vxor.u32 %v73, 2147483648
  %77 = xla_tuple %v76
  %s78 = scalar_lea.vmem %s1, 72
  %79 = vst [vmem:[%s78] sm:$0xff] %v76
  %s80 = scalar_lea.vmem %s0, 80
  %v81 = vld [vmem:[%s80] sm:$0xff]
  %82 = xla_tuple %v81
  %83 = xla_tuple %82
  %v84 = vxor.u32 %v81, 2147483648
  %85 = xla_tuple %v84
  %s86 = scalar_lea.vmem %s1, 80
  %87 = vst [vmem:[%s86] sm:$0xff] %v84
  %s88 = scalar_lea.vmem %s0, 88
  %v89 = vld [vmem:[%s88] sm:$0xff]
  %90 = xla_tuple %v89
  %91 = xla_tuple %90
  %v92 = vxor.u32 %v89, 2147483648
  %93 = xla_tuple %v92
  %s94 = scalar_lea.vmem %s1, 88
  %95 = vst [vmem:[%s94] sm:$0xff] %v92
  %s96 = scalar_lea.vmem %s0, 96
  %v97 = vld [vmem:[%s96] sm:$0xff]
  %98 = xla_tuple %v97
  %99 = xla_tuple %98
  %v100 = vxor.u32 %v97, 2147483648
  %101 = xla_tuple %v100
  %s102 = scalar_lea.vmem %s1, 96
  %103 = vst [vmem:[%s102] sm:$0xff] %v100
  %s104 = scalar_lea.vmem %s0, 104
  %v105 = vld [vmem:[%s104] sm:$0xff]
  %106 = xla_tuple %v105
  %107 = xla_tuple %106
  %v108 = vxor.u32 %v105, 2147483648
  %109 = xla_tuple %v108
  %s110 = scalar_lea.vmem %s1, 104
  %111 = vst [vmem:[%s110] sm:$0xff] %v108
  %s112 = scalar_lea.vmem %s0, 112
  %v113 = vld [vmem:[%s112] sm:$0xff]
  %114 = xla_tuple %v113
  %115 = xla_tuple %114
  %v116 = vxor.u32 %v113, 2147483648
  %117 = xla_tuple %v116
  %s118 = scalar_lea.vmem %s1, 112
  %119 = vst [vmem:[%s118] sm:$0xff] %v116
  %s120 = scalar_lea.vmem %s0, 120
  %v121 = vld [vmem:[%s120] sm:$0xff]
  %122 = xla_tuple %v121
  %123 = xla_tuple %122
  %v124 = vxor.u32 %v121, 2147483648
  %125 = xla_tuple %v124
  %s126 = scalar_lea.vmem %s1, 120
  %127 = vst [vmem:[%s126] sm:$0xff] %v124

// kernel: _lambda_.2
$region0: #{_lambda_.2}
  #allocation0 [shape = 'u32[]', space=smem, size = 0x4, offset = 0x4, fixed_abs, tag = 'smem constant byte address 0x4 - core index']
  #allocation1 [shape = 'u32[144,128]{1,0:T(1,128)}', space=vmem, size = 0x12000, scoped, tag = 'internal scratch']
  %s0 = inlined_call_operand.vmem [shape: f32[128,32], index: 0, kind: input, shape index: {}, may-alias: {0,1}]
  %s1 = inlined_call_operand.vmem [shape: f32[128,32], index: 1, kind: input, shape index: {}, may-alias: {0,1}]
  %s2 = inlined_call_operand.vmem [shape: f32[128,1], index: 2, kind: input, shape index: {}]
  %s3 = inlined_call_operand.vmem [shape: f32[1,128], index: 3, kind: input, shape index: {}]
  %s4 = inlined_call_operand.vmem [shape: f32[128,128], index: 4, kind: output, shape index: {}]
  %s5 = sld [smem:[#allocation0]]
  $region26: #{_lambda_.2} parent=0
    _
  %s7 = ssub.s32 1, %s5
  %s8 = scalar_select 0, %s7, %s5
  // Predicated region
  $region2: #{_lambda_.2} parent=0 // pred_check
    _
  $region3: #{_lambda_.2} parent=0 // pred_check_branch
    %10 = sbr.rel (0) target = $region5
  $region4: #{_lambda_.2} parent=0 // pred_region
    _
  $region5: #{_lambda_.2} parent=0 // pred_fallthru
    _
  // Predicated region
  $region6: #{_lambda_.2} parent=0 // pred_check
    _
  $region7: #{_lambda_.2} parent=0 // pred_check_branch
    %12 = sbr.rel (0) target = $region9
  $region8: #{_lambda_.2} parent=0 // pred_region
    _
  $region9: #{_lambda_.2} parent=0 // pred_fallthru
    _
  // Predicated region
  $region10: #{_lambda_.2} parent=0 // pred_check
    _
  $region11: #{_lambda_.2} parent=0 // pred_check_branch
    %14 = sbr.rel (0) target = $region13
  $region12: #{_lambda_.2} parent=0 // pred_region
    _
  $region13: #{_lambda_.2} parent=0 // pred_fallthru
    _
  // Predicated region
  $region14: #{_lambda_.2} parent=0 // pred_check
    _
  $region15: #{_lambda_.2} parent=0 // pred_check_branch
    %16 = sbr.rel (0) target = $region17
  $region16: #{_lambda_.2} parent=0 // pred_region
    _
  $region17: #{_lambda_.2} parent=0 // pred_fallthru
    _
  %v17 = vld [vmem:[%s0] sm:$0xff]
  %v18 = vld [vmem:[%s0 + $0x8] sm:$0xff]
  %v19 = vld [vmem:[%s0 + $0x10] sm:$0xff]
  %v20 = vld [vmem:[%s0 + $0x18] sm:$0xff]
  %v21 = vld [vmem:[%s0 + $0x20] sm:$0xff]
  %v22 = vld [vmem:[%s0 + $0x28] sm:$0xff]
  %v23 = vld [vmem:[%s0 + $0x30] sm:$0xff]
  %v24 = vld [vmem:[%s0 + $0x38] sm:$0xff]
  %v25 = vld [vmem:[%s0 + $0x40] sm:$0xff]
  %v26 = vld [vmem:[%s0 + $0x48] sm:$0xff]
  %v27 = vld [vmem:[%s0 + $0x50] sm:$0xff]
  %v28 = vld [vmem:[%s0 + $0x58] sm:$0xff]
  %v29 = vld [vmem:[%s0 + $0x60] sm:$0xff]
  %v30 = vld [vmem:[%s0 + $0x68] sm:$0xff]
  %v31 = vld [vmem:[%s0 + $0x70] sm:$0xff]
  %v32 = vld [vmem:[%s0 + $0x78] sm:$0xff]
  %v33 = vld [vmem:[%s1] sm:$0xff]
  %v34 = vld [vmem:[%s1 + $0x8] sm:$0xff]
  %v35 = vld [vmem:[%s1 + $0x10] sm:$0xff]
  %v36 = vld [vmem:[%s1 + $0x18] sm:$0xff]
  %v37 = vld [vmem:[%s1 + $0x20] sm:$0xff]
  %v38 = vld [vmem:[%s1 + $0x28] sm:$0xff]
  %v39 = vld [vmem:[%s1 + $0x30] sm:$0xff]
  %v40 = vld [vmem:[%s1 + $0x38] sm:$0xff]
  %v41 = vld [vmem:[%s1 + $0x40] sm:$0xff]
  %v42 = vld [vmem:[%s1 + $0x48] sm:$0xff]
  %v43 = vld [vmem:[%s1 + $0x50] sm:$0xff]
  %v44 = vld [vmem:[%s1 + $0x58] sm:$0xff]
  %v45 = vld [vmem:[%s1 + $0x60] sm:$0xff]
  %v46 = vld [vmem:[%s1 + $0x68] sm:$0xff]
  %v47 = vld [vmem:[%s1 + $0x70] sm:$0xff]
  %v48 = vld [vmem:[%s1 + $0x78] sm:$0xff]
  %vm49 = vcmask 261120
  %v51 = vsel %vm49, %v17, 0
  %v54 = vsel %vm49, %v18, 0
  %v57 = vsel %vm49, %v19, 0
  %v60 = vsel %vm49, %v20, 0
  %v63 = vsel %vm49, %v21, 0
  %v66 = vsel %vm49, %v22, 0
  %v69 = vsel %vm49, %v23, 0
  %v72 = vsel %vm49, %v24, 0
  %v75 = vsel %vm49, %v25, 0
  %v78 = vsel %vm49, %v26, 0
  %v81 = vsel %vm49, %v27, 0
  %v84 = vsel %vm49, %v28, 0
  %v87 = vsel %vm49, %v29, 0
  %v90 = vsel %vm49, %v30, 0
  %v93 = vsel %vm49, %v31, 0
  %v96 = vsel %vm49, %v32, 0
  %v99 = vsel %vm49, %v33, 0
  %v102 = vsel %vm49, %v34, 0
  %v105 = vsel %vm49, %v35, 0
  %v108 = vsel %vm49, %v36, 0
  %v111 = vsel %vm49, %v37, 0
  %v114 = vsel %vm49, %v38, 0
  %v117 = vsel %vm49, %v39, 0
  %v120 = vsel %vm49, %v40, 0
  %v123 = vsel %vm49, %v41, 0
  %v126 = vsel %vm49, %v42, 0
  %v129 = vsel %vm49, %v43, 0
  %v132 = vsel %vm49, %v44, 0
  %v135 = vsel %vm49, %v45, 0
  %v138 = vsel %vm49, %v46, 0
  %v141 = vsel %vm49, %v47, 0
  %v144 = vsel %vm49, %v48, 0
  %146 = vmatprep.subr.mxu0 0.0
  %147 = vmatpush1.xpose.msra.mxu0 %v99
  %148 = vmatprep.subr.mxu0 0.0
  %149 = vmatpush1.xpose.msra.mxu0 %v102
  %150 = vmatprep.subr.mxu0 0.0
  %151 = vmatpush1.xpose.msra.mxu0 %v105
  %152 = vmatprep.subr.mxu0 0.0
  %153 = vmatpush1.xpose.msra.mxu0 %v108
  %154 = vmatprep.subr.mxu0 0.0
  %155 = vmatpush1.xpose.msra.mxu0 %v111
  %156 = vmatprep.subr.mxu0 0.0
  %157 = vmatpush1.xpose.msra.mxu0 %v114
  %158 = vmatprep.subr.mxu0 0.0
  %159 = vmatpush1.xpose.msra.mxu0 %v117
  %160 = vmatprep.subr.mxu0 0.0
  %161 = vmatpush1.xpose.msra.mxu0 %v120
  %162 = vmatprep.subr.mxu0 0.0
  %163 = vmatpush1.xpose.msra.mxu0 %v123
  %164 = vmatprep.subr.mxu0 0.0
  %165 = vmatpush1.xpose.msra.mxu0 %v126
  %166 = vmatprep.subr.mxu0 0.0
  %167 = vmatpush1.xpose.msra.mxu0 %v129
  %168 = vmatprep.subr.mxu0 0.0
  %169 = vmatpush1.xpose.msra.mxu0 %v132
  %170 = vmatprep.subr.mxu0 0.0
  %171 = vmatpush1.xpose.msra.mxu0 %v135
  %172 = vmatprep.subr.mxu0 0.0
  %173 = vmatpush1.xpose.msra.mxu0 %v138
  %174 = vmatprep.subr.mxu0 0.0
  %175 = vmatpush1.xpose.msra.mxu0 %v141
  %176 = vmatprep.subr.mxu0 0.0
  %177 = vmatpush1.xpose.msra.mxu0 %v144
  %178 = vmatprep.subr.mxu0 0.0
  %179 = vmatpush1.xpose.msra.mxu0 0.0
  %180 = vmatprep.subr.mxu0 0.0
  %181 = vmatpush1.xpose.msra.mxu0 0.0
  %182 = vmatprep.subr.mxu0 0.0
  %183 = vmatpush1.xpose.msra.mxu0 0.0
  %184 = vmatprep.subr.mxu0 0.0
  %185 = vmatpush1.xpose.msra.mxu0 0.0
  %186 = vmatprep.subr.mxu0 0.0
  %187 = vmatpush1.xpose.msra.mxu0 0.0
  %188 = vmatprep.subr.mxu0 0.0
  %189 = vmatpush1.xpose.msra.mxu0 0.0
  %190 = vmatprep.subr.mxu0 0.0
  %191 = vmatpush1.xpose.msra.mxu0 0.0
  %192 = vmatprep.subr.mxu0 0.0
  %193 = vmatpush1.xpose.msra.mxu0 0.0
  %194 = vmatprep.subr.mxu0 0.0
  %195 = vmatpush1.xpose.msra.mxu0 0.0
  %196 = vmatprep.subr.mxu0 0.0
  %197 = vmatpush1.xpose.msra.mxu0 0.0
  %198 = vmatprep.subr.mxu0 0.0
  %199 = vmatpush1.xpose.msra.mxu0 0.0
  %200 = vmatprep.subr.mxu0 0.0
  %201 = vmatpush1.xpose.msra.mxu0 0.0
  %202 = vmatprep.subr.mxu0 0.0
  %203 = vmatpush1.xpose.msra.mxu0 0.0
  %204 = vmatprep.subr.mxu0 0.0
  %205 = vmatpush1.xpose.msra.mxu0 0.0
  %206 = vmatprep.subr.mxu0 0.0
  %207 = vmatpush1.xpose.msra.mxu0 0.0
  %208 = vmatprep.subr.mxu0 0.0
  %209 = vmatpush1.xpose.msra.mxu0 0.0
  %210 = vmatprep.mubr.f32.mxu0 0.0
  %211 = vmatmul.mubr.f32.gmra.mrb[0].mxu0 %v51
  %v212 = vpop.f32.mrb[0].mxu0
  %v213 = vadd.f32 0.0, %v212
  %v214 = vpop.f32.mrb[0].mxu0
  %215 = vmatprep.mubr.f32.mxu0 0.0
  %216 = vmatmul.mubr.f32.gmra.mrb[0].mxu0 %v54
  %v217 = vpop.f32.mrb[0].mxu0
  %v218 = vadd.f32 0.0, %v217
  %v219 = vpop.f32.mrb[0].mxu0
  %220 = vmatprep.mubr.f32.mxu0 0.0
  %221 = vmatmul.mubr.f32.gmra.mrb[0].mxu0 %v57
  %v222 = vpop.f32.mrb[0].mxu0
  %v223 = vadd.f32 0.0, %v222
  %v224 = vpop.f32.mrb[0].mxu0
  %225 = vmatprep.mubr.f32.mxu0 0.0
  %226 = vmatmul.mubr.f32.gmra.mrb[0].mxu0 %v60
  %v227 = vpop.f32.mrb[0].mxu0
  %v228 = vadd.f32 0.0, %v227
  %v229 = vpop.f32.mrb[0].mxu0
  %230 = vmatprep.mubr.f32.mxu0 0.0
  %231 = vmatmul.mubr.f32.gmra.mrb[0].mxu0 %v63
  %v232 = vpop.f32.mrb[0].mxu0
  %v233 = vadd.f32 0.0, %v232
  %v234 = vpop.f32.mrb[0].mxu0
  %235 = vmatprep.mubr.f32.mxu0 0.0
  %236 = vmatmul.mubr.f32.gmra.mrb[0].mxu0 %v66
  %v237 = vpop.f32.mrb[0].mxu0
  %v238 = vadd.f32 0.0, %v237
  %v239 = vpop.f32.mrb[0].mxu0
  %240 = vmatprep.mubr.f32.mxu0 0.0
  %241 = vmatmul.mubr.f32.gmra.mrb[0].mxu0 %v69
  %v242 = vpop.f32.mrb[0].mxu0
  %v243 = vadd.f32 0.0, %v242
  %v244 = vpop.f32.mrb[0].mxu0
  %245 = vmatprep.mubr.f32.mxu0 0.0
  %246 = vmatmul.mubr.f32.gmra.mrb[0].mxu0 %v72
  %v247 = vpop.f32.mrb[0].mxu0
  %v248 = vadd.f32 0.0, %v247
  %v249 = vpop.f32.mrb[0].mxu0
  %250 = vmatprep.mubr.f32.mxu0 0.0
  %251 = vmatmul.mubr.f32.gmra.mrb[0].mxu0 %v75
  %v252 = vpop.f32.mrb[0].mxu0
  %v253 = vadd.f32 0.0, %v252
  %v254 = vpop.f32.mrb[0].mxu0
  %255 = vmatprep.mubr.f32.mxu0 0.0
  %256 = vmatmul.mubr.f32.gmra.mrb[0].mxu0 %v78
  %v257 = vpop.f32.mrb[0].mxu0
  %v258 = vadd.f32 0.0, %v257
  %v259 = vpop.f32.mrb[0].mxu0
  %260 = vmatprep.mubr.f32.mxu0 0.0
  %261 = vmatmul.mubr.f32.gmra.mrb[0].mxu0 %v81
  %v262 = vpop.f32.mrb[0].mxu0
  %v263 = vadd.f32 0.0, %v262
  %v264 = vpop.f32.mrb[0].mxu0
  %265 = vmatprep.mubr.f32.mxu0 0.0
  %266 = vmatmul.mubr.f32.gmra.mrb[0].mxu0 %v84
  %v267 = vpop.f32.mrb[0].mxu0
  %v268 = vadd.f32 0.0, %v267
  %v269 = vpop.f32.mrb[0].mxu0
  %270 = vmatprep.mubr.f32.mxu0 0.0
  %271 = vmatmul.mubr.f32.gmra.mrb[0].mxu0 %v87
  %v272 = vpop.f32.mrb[0].mxu0
  %v273 = vadd.f32 0.0, %v272
  %v274 = vpop.f32.mrb[0].mxu0
  %275 = vmatprep.mubr.f32.mxu0 0.0
  %276 = vmatmul.mubr.f32.gmra.mrb[0].mxu0 %v90
  %v277 = vpop.f32.mrb[0].mxu0
  %v278 = vadd.f32 0.0, %v277
  %v279 = vpop.f32.mrb[0].mxu0
  %280 = vmatprep.mubr.f32.mxu0 0.0
  %281 = vmatmul.mubr.f32.gmra.mrb[0].mxu0 %v93
  %v282 = vpop.f32.mrb[0].mxu0
  %v283 = vadd.f32 0.0, %v282
  %v284 = vpop.f32.mrb[0].mxu0
  %285 = vmatprep.mubr.f32.mxu0 0.0
  %286 = vmatmul.mubr.f32.gmra.mrb[0].mxu0 %v96
  %v287 = vpop.f32.mrb[0].mxu0
  %v288 = vadd.f32 0.0, %v287
  %v289 = vpop.f32.mrb[0].mxu0
  %290 = vdwg.mxu0
  %v291 = vld [vmem:[%s2] sm:$0xff]
  %v292 = vld [vmem:[%s2 + $0x8] sm:$0xff]
  %v293 = vld [vmem:[%s2 + $0x10] sm:$0xff]
  %v294 = vld [vmem:[%s2 + $0x18] sm:$0xff]
  %v295 = vld [vmem:[%s2 + $0x20] sm:$0xff]
  %v296 = vld [vmem:[%s2 + $0x28] sm:$0xff]
  %v297 = vld [vmem:[%s2 + $0x30] sm:$0xff]
  %v298 = vld [vmem:[%s2 + $0x38] sm:$0xff]
  %v299 = vld [vmem:[%s2 + $0x40] sm:$0xff]
  %v300 = vld [vmem:[%s2 + $0x48] sm:$0xff]
  %v301 = vld [vmem:[%s2 + $0x50] sm:$0xff]
  %v302 = vld [vmem:[%s2 + $0x58] sm:$0xff]
  %v303 = vld [vmem:[%s2 + $0x60] sm:$0xff]
  %v304 = vld [vmem:[%s2 + $0x68] sm:$0xff]
  %v305 = vld [vmem:[%s2 + $0x70] sm:$0xff]
  %v306 = vld [vmem:[%s2 + $0x78] sm:$0xff]
  %v307 = vld [vmem:[%s3] sm:$0x1]
  %309 = vset.pattern.permute.xlu0 0
  %310 = vperm.xlu0 %309, %v291
  %v311 = vpop.permute.xlu0 %310
  %314 = vset.pattern.permute.xlu0 0
  %315 = vperm.xlu0 %314, %v292
  %v316 = vpop.permute.xlu0 %315
  %319 = vset.pattern.permute.xlu0 0
  %320 = vperm.xlu0 %319, %v293
  %v321 = vpop.permute.xlu0 %320
  %324 = vset.pattern.permute.xlu0 0
  %325 = vperm.xlu0 %324, %v294
  %v326 = vpop.permute.xlu0 %325
  %329 = vset.pattern.permute.xlu0 0
  %330 = vperm.xlu0 %329, %v295
  %v331 = vpop.permute.xlu0 %330
  %334 = vset.pattern.permute.xlu0 0
  %335 = vperm.xlu0 %334, %v296
  %v336 = vpop.permute.xlu0 %335
  %339 = vset.pattern.permute.xlu0 0
  %340 = vperm.xlu0 %339, %v297
  %v341 = vpop.permute.xlu0 %340
  %344 = vset.pattern.permute.xlu0 0
  %345 = vperm.xlu0 %344, %v298
  %v346 = vpop.permute.xlu0 %345
  %349 = vset.pattern.permute.xlu0 0
  %350 = vperm.xlu0 %349, %v299
  %v351 = vpop.permute.xlu0 %350
  %354 = vset.pattern.permute.xlu0 0
  %355 = vperm.xlu0 %354, %v300
  %v356 = vpop.permute.xlu0 %355
  %359 = vset.pattern.permute.xlu0 0
  %360 = vperm.xlu0 %359, %v301
  %v361 = vpop.permute.xlu0 %360
  %364 = vset.pattern.permute.xlu0 0
  %365 = vperm.xlu0 %364, %v302
  %v366 = vpop.permute.xlu0 %365
  %369 = vset.pattern.permute.xlu0 0
  %370 = vperm.xlu0 %369, %v303
  %v371 = vpop.permute.xlu0 %370
  %374 = vset.pattern.permute.xlu0 0
  %375 = vperm.xlu0 %374, %v304
  %v376 = vpop.permute.xlu0 %375
  %379 = vset.pattern.permute.xlu0 0
  %380 = vperm.xlu0 %379, %v305
  %v381 = vpop.permute.xlu0 %380
  %384 = vset.pattern.permute.xlu0 0
  %385 = vperm.xlu0 %384, %v306
  %v386 = vpop.permute.xlu0 %385
  %v389 = vlaneseq
  %v390 = vshrl.u32 %v389, 7
  %v391 = vsub.s32 0, %v390
  %v392 = vrot.slane %v307, %v391
  %v394 = vadd.f32 %v311, %v392
  %v395 = vadd.f32 %v316, %v392
  %v396 = vadd.f32 %v321, %v392
  %v397 = vadd.f32 %v326, %v392
  %v398 = vadd.f32 %v331, %v392
  %v399 = vadd.f32 %v336, %v392
  %v400 = vadd.f32 %v341, %v392
  %v401 = vadd.f32 %v346, %v392
  %v402 = vadd.f32 %v351, %v392
  %v403 = vadd.f32 %v356, %v392
  %v404 = vadd.f32 %v361, %v392
  %v405 = vadd.f32 %v366, %v392
  %v406 = vadd.f32 %v371, %v392
  %v407 = vadd.f32 %v376, %v392
  %v408 = vadd.f32 %v381, %v392
  %v409 = vadd.f32 %v386, %v392
  %v410 = vmul.f32 %v213, 2.0
  %v411 = vmul.f32 %v218, 2.0
  %v412 = vmul.f32 %v223, 2.0
  %v413 = vmul.f32 %v228, 2.0
  %v414 = vmul.f32 %v233, 2.0
  %v415 = vmul.f32 %v238, 2.0
  %v416 = vmul.f32 %v243, 2.0
  %v417 = vmul.f32 %v248, 2.0
  %v418 = vmul.f32 %v253, 2.0
  %v419 = vmul.f32 %v258, 2.0
  %v420 = vmul.f32 %v263, 2.0
  %v421 = vmul.f32 %v268, 2.0
  %v422 = vmul.f32 %v273, 2.0
  %v423 = vmul.f32 %v278, 2.0
  %v424 = vmul.f32 %v283, 2.0
  %v425 = vmul.f32 %v288, 2.0
  %v426 = vsub.f32 %v394, %v410
  %v427 = vsub.f32 %v395, %v411
  %v428 = vsub.f32 %v396, %v412
  %v429 = vsub.f32 %v397, %v413
  %v430 = vsub.f32 %v398, %v414
  %v431 = vsub.f32 %v399, %v415
  %v432 = vsub.f32 %v400, %v416
  %v433 = vsub.f32 %v401, %v417
  %v434 = vsub.f32 %v402, %v418
  %v435 = vsub.f32 %v403, %v419
  %v436 = vsub.f32 %v404, %v420
  %v437 = vsub.f32 %v405, %v421
  %v438 = vsub.f32 %v406, %v422
  %v439 = vsub.f32 %v407, %v423
  %v440 = vsub.f32 %v408, %v424
  %v441 = vsub.f32 %v409, %v425
  %442 = vst [vmem:[%s4] sm:$0xff] %v426
  %443 = vst [vmem:[%s4 + $0x8] sm:$0xff] %v427
  %444 = vst [vmem:[%s4 + $0x10] sm:$0xff] %v428
  %445 = vst [vmem:[%s4 + $0x18] sm:$0xff] %v429
  %446 = vst [vmem:[%s4 + $0x20] sm:$0xff] %v430
  %447 = vst [vmem:[%s4 + $0x28] sm:$0xff] %v431
  %448 = vst [vmem:[%s4 + $0x30] sm:$0xff] %v432
  %449 = vst [vmem:[%s4 + $0x38] sm:$0xff] %v433
  %450 = vst [vmem:[%s4 + $0x40] sm:$0xff] %v434
  %451 = vst [vmem:[%s4 + $0x48] sm:$0xff] %v435
  %452 = vst [vmem:[%s4 + $0x50] sm:$0xff] %v436
  %453 = vst [vmem:[%s4 + $0x58] sm:$0xff] %v437
  %454 = vst [vmem:[%s4 + $0x60] sm:$0xff] %v438
  %455 = vst [vmem:[%s4 + $0x68] sm:$0xff] %v439
  %456 = vst [vmem:[%s4 + $0x70] sm:$0xff] %v440
  %457 = vst [vmem:[%s4 + $0x78] sm:$0xff] %v441
  // Predicated region
  $region18: #{_lambda_.2} parent=0 // pred_check
    _
  $region19: #{_lambda_.2} parent=0 // pred_check_branch
    %459 = sbr.rel (0) target = $region21
  $region20: #{_lambda_.2} parent=0 // pred_region
    _
  $region21: #{_lambda_.2} parent=0 // pred_fallthru
    _
  // Predicated region
  $region22: #{_lambda_.2} parent=0 // pred_check
    _
  $region23: #{_lambda_.2} parent=0 // pred_check_branch
    %461 = sbr.rel (0) target = $region25
  $region24: #{_lambda_.2} parent=0 // pred_region
    _
  $region25: #{_lambda_.2} parent=0 // pred_fallthru
    _

// kernel: _lambda_.3
$region0: #{_lambda_.3}
  #allocation0 [shape = 'u32[]', space=smem, size = 0x4, offset = 0x4, fixed_abs, tag = 'smem constant byte address 0x4 - core index']
  #allocation1 [shape = 'u32[144,128]{1,0:T(1,128)}', space=vmem, size = 0x12000, scoped, tag = 'internal scratch']
  #allocation2 [shape = 'f32[128,128]{1,0:T(8,128)}', space=vmem, size = 0x10000, scoped, tag = 'scratch operand']
  #allocation3 [shape = 'f32[128,128]{1,0:T(8,128)}', space=vmem, size = 0x10000, scoped, tag = 'scratch operand']
  #allocation4 [shape = 'f32[128,128]{1,0:T(8,128)}', space=vmem, size = 0x10000, scoped, tag = 'scratch operand']
  #allocation5 [shape = 's32[1]{0}', space=sflag, size = 0x4, scoped, tag = 'scoped memory for _lambda_.3']
  #allocation6 [shape = 'u8[512]{0}', space=smem, size = 0x200, scoped, tag = 'prefetched SMEM operand 0']
  %s0 = inlined_call_operand.vmem [shape: f32[2], index: 0, kind: input, shape index: {}]
  %s1 = inlined_call_operand.hbm [shape: f32[128,128], index: 1, kind: input, shape index: {}, may-alias: {1,2}]
  %s2 = inlined_call_operand.hbm [shape: f32[128,128], index: 2, kind: input, shape index: {}, may-alias: {1,2}]
  %s3 = inlined_call_operand.vmem [shape: f32[128,2], index: 3, kind: input, shape index: {}]
  %s4 = inlined_call_operand.vmem [shape: f32[2,128], index: 4, kind: input, shape index: {}]
  %s5 = inlined_call_operand.vmem [shape: f32[128,1], index: 5, kind: output, shape index: {0}]
  %s6 = inlined_call_operand.vmem [shape: f32[128,1], index: 6, kind: output, shape index: {1}]
  %s7 = inlined_call_operand.vmem [shape: f32[128,1], index: 7, kind: output, shape index: {2}]
  %8 = xla_tuple %s5, %s6, %s7
  %s9 = sld [smem:[#allocation0]]
  $region62: #{_lambda_.3} parent=0
    _
  %s11 = ssub.s32 1, %s9
  %s12 = scalar_select 0, %s11, %s9
  %s13 = sshll.u32 %s0, 4
  %s14 = int_to_ptr.vmem [resolvable:$true] %s13
  %16 = dma.vmem_to_smem %s14, 16, [#allocation6], [#allocation5]
  %17 = dma.done [#allocation5], 16
  %18 = sfence
  $region1: #{_lambda_.3} parent=0
    #allocation7 [shape = 'u8[65536]{0}', space=vmem, size = 0x10000, scoped, tag = 'input window, operand 1, single buffered']
    #allocation8 [shape = 's32[1]{0}', space=sflag, size = 0x4, scoped, tag = 'scoped memory for _lambda_.3']
    #allocation9 [shape = 'u8[65536]{0}', space=vmem, size = 0x10000, scoped, tag = 'input window, operand 2, single buffered']
    #allocation10 [shape = 's32[1]{0}', space=sflag, size = 0x4, scoped, tag = 'scoped memory for _lambda_.3']
    %19 = vsyncpa [#allocation8], 0
    %20 = vsyncpa [#allocation10], 0
    // Predicated region
    $region2: #{_lambda_.3} parent=1 // pred_check
      _
    $region3: #{_lambda_.3} parent=1 // pred_check_branch
      %22 = sbr.rel (0) target = $region5
    $region4: #{_lambda_.3} parent=1 // pred_region
      %s24 = ssub.s32 2048, 2048
      %25 = vsyncadd [#allocation8], %s24
      %s26 = sshll.u32 [#allocation7], 4
      %s27 = int_to_ptr.vmem [resolvable:$true] %s26
      %32 = dma.hbm_to_vmem [thread:$0]  %s1, 2048, %s27, [#allocation8], 128, 128, 8
    $region5: #{_lambda_.3} parent=1 // pred_fallthru
      _
    // Predicated region
    $region6: #{_lambda_.3} parent=1 // pred_check
      _
    $region7: #{_lambda_.3} parent=1 // pred_check_branch
      %34 = sbr.rel (0) target = $region9
    $region8: #{_lambda_.3} parent=1 // pred_region
      %s36 = ssub.s32 2048, 2048
      %37 = vsyncadd [#allocation10], %s36
      %s38 = sshll.u32 [#allocation9], 4
      %s39 = int_to_ptr.vmem [resolvable:$true] %s38
      %44 = dma.hbm_to_vmem [thread:$0]  %s2, 2048, %s39, [#allocation10], 128, 128, 8
    $region9: #{_lambda_.3} parent=1 // pred_fallthru
      _
    // Predicated region
    $region10: #{_lambda_.3} parent=1 // pred_check
      _
    $region11: #{_lambda_.3} parent=1 // pred_check_branch
      %46 = sbr.rel (0) target = $region13
    $region12: #{_lambda_.3} parent=1 // pred_region
      _
    $region13: #{_lambda_.3} parent=1 // pred_fallthru
      _
    // Predicated region
    $region14: #{_lambda_.3} parent=1 // pred_check
      _
    $region15: #{_lambda_.3} parent=1 // pred_check_branch
      %48 = sbr.rel (0) target = $region17
    $region16: #{_lambda_.3} parent=1 // pred_region
      _
    $region17: #{_lambda_.3} parent=1 // pred_fallthru
      _
    // Predicated region
    $region18: #{_lambda_.3} parent=1 // pred_check
      _
    $region19: #{_lambda_.3} parent=1 // pred_check_branch
      %50 = sbr.rel (0) target = $region21
    $region20: #{_lambda_.3} parent=1 // pred_region
      %51 = dma.done [#allocation8], 2048
    $region21: #{_lambda_.3} parent=1 // pred_fallthru
      _
    // Predicated region
    $region22: #{_lambda_.3} parent=1 // pred_check
      _
    $region23: #{_lambda_.3} parent=1 // pred_check_branch
      %53 = sbr.rel (0) target = $region25
    $region24: #{_lambda_.3} parent=1 // pred_region
      %54 = dma.done [#allocation10], 2048
    $region25: #{_lambda_.3} parent=1 // pred_fallthru
      _
    %p55 = scmp.eq.s32.totalorder 0, 0
    // Predicated region
    $region26: #{_lambda_.3} parent=1 // pred_check
      %p56 = pneg %p55
    $region27: #{_lambda_.3} parent=1 // pred_check_branch
      %58 = sbr.rel (%p56) target = $region29
    $region28: #{_lambda_.3} parent=1 // pred_region
      %59 = vst [vmem:[#allocation2] sm:$0xff] 0.0
      %60 = vst [vmem:[#allocation2 + $0x8] sm:$0xff] 0.0
      %61 = vst [vmem:[#allocation2 + $0x10] sm:$0xff] 0.0
      %62 = vst [vmem:[#allocation2 + $0x18] sm:$0xff] 0.0
      %63 = vst [vmem:[#allocation2 + $0x20] sm:$0xff] 0.0
      %64 = vst [vmem:[#allocation2 + $0x28] sm:$0xff] 0.0
      %65 = vst [vmem:[#allocation2 + $0x30] sm:$0xff] 0.0
      %66 = vst [vmem:[#allocation2 + $0x38] sm:$0xff] 0.0
      %67 = vst [vmem:[#allocation2 + $0x40] sm:$0xff] 0.0
      %68 = vst [vmem:[#allocation2 + $0x48] sm:$0xff] 0.0
      %69 = vst [vmem:[#allocation2 + $0x50] sm:$0xff] 0.0
      %70 = vst [vmem:[#allocation2 + $0x58] sm:$0xff] 0.0
      %71 = vst [vmem:[#allocation2 + $0x60] sm:$0xff] 0.0
      %72 = vst [vmem:[#allocation2 + $0x68] sm:$0xff] 0.0
      %73 = vst [vmem:[#allocation2 + $0x70] sm:$0xff] 0.0
      %74 = vst [vmem:[#allocation2 + $0x78] sm:$0xff] 0.0
      %75 = vst [vmem:[#allocation3] sm:$0xff] 0.0
      %76 = vst [vmem:[#allocation3 + $0x8] sm:$0xff] 0.0
      %77 = vst [vmem:[#allocation3 + $0x10] sm:$0xff] 0.0
      %78 = vst [vmem:[#allocation3 + $0x18] sm:$0xff] 0.0
      %79 = vst [vmem:[#allocation3 + $0x20] sm:$0xff] 0.0
      %80 = vst [vmem:[#allocation3 + $0x28] sm:$0xff] 0.0
      %81 = vst [vmem:[#allocation3 + $0x30] sm:$0xff] 0.0
      %82 = vst [vmem:[#allocation3 + $0x38] sm:$0xff] 0.0
      %83 = vst [vmem:[#allocation3 + $0x40] sm:$0xff] 0.0
      %84 = vst [vmem:[#allocation3 + $0x48] sm:$0xff] 0.0
      %85 = vst [vmem:[#allocation3 + $0x50] sm:$0xff] 0.0
      %86 = vst [vmem:[#allocation3 + $0x58] sm:$0xff] 0.0
      %87 = vst [vmem:[#allocation3 + $0x60] sm:$0xff] 0.0
      %88 = vst [vmem:[#allocation3 + $0x68] sm:$0xff] 0.0
      %89 = vst [vmem:[#allocation3 + $0x70] sm:$0xff] 0.0
      %90 = vst [vmem:[#allocation3 + $0x78] sm:$0xff] 0.0
      %91 = vst [vmem:[#allocation4] sm:$0xff] 0.0
      %92 = vst [vmem:[#allocation4 + $0x8] sm:$0xff] 0.0
      %93 = vst [vmem:[#allocation4 + $0x10] sm:$0xff] 0.0
      %94 = vst [vmem:[#allocation4 + $0x18] sm:$0xff] 0.0
      %95 = vst [vmem:[#allocation4 + $0x20] sm:$0xff] 0.0
      %96 = vst [vmem:[#allocation4 + $0x28] sm:$0xff] 0.0
      %97 = vst [vmem:[#allocation4 + $0x30] sm:$0xff] 0.0
      %98 = vst [vmem:[#allocation4 + $0x38] sm:$0xff] 0.0
      %99 = vst [vmem:[#allocation4 + $0x40] sm:$0xff] 0.0
      %100 = vst [vmem:[#allocation4 + $0x48] sm:$0xff] 0.0
      %101 = vst [vmem:[#allocation4 + $0x50] sm:$0xff] 0.0
      %102 = vst [vmem:[#allocation4 + $0x58] sm:$0xff] 0.0
      %103 = vst [vmem:[#allocation4 + $0x60] sm:$0xff] 0.0
      %104 = vst [vmem:[#allocation4 + $0x68] sm:$0xff] 0.0
      %105 = vst [vmem:[#allocation4 + $0x70] sm:$0xff] 0.0
      %106 = vst [vmem:[#allocation4 + $0x78] sm:$0xff] 0.0
    $region29: #{_lambda_.3} parent=1 // pred_fallthru
      _
    %v107 = vld [vmem:[%s3] sm:$0xff]
    %v108 = vld [vmem:[%s3 + $0x8] sm:$0xff]
    %v109 = vld [vmem:[%s3 + $0x10] sm:$0xff]
    %v110 = vld [vmem:[%s3 + $0x18] sm:$0xff]
    %v111 = vld [vmem:[%s3 + $0x20] sm:$0xff]
    %v112 = vld [vmem:[%s3 + $0x28] sm:$0xff]
    %v113 = vld [vmem:[%s3 + $0x30] sm:$0xff]
    %v114 = vld [vmem:[%s3 + $0x38] sm:$0xff]
    %v115 = vld [vmem:[%s3 + $0x40] sm:$0xff]
    %v116 = vld [vmem:[%s3 + $0x48] sm:$0xff]
    %v117 = vld [vmem:[%s3 + $0x50] sm:$0xff]
    %v118 = vld [vmem:[%s3 + $0x58] sm:$0xff]
    %v119 = vld [vmem:[%s3 + $0x60] sm:$0xff]
    %v120 = vld [vmem:[%s3 + $0x68] sm:$0xff]
    %v121 = vld [vmem:[%s3 + $0x70] sm:$0xff]
    %v122 = vld [vmem:[%s3 + $0x78] sm:$0xff]
    %v123 = vld [vmem:[%s4] sm:$0x3]
    %125 = vset.pattern.permute.xlu0 0
    %126 = vperm.xlu0 %125, %v107
    %v127 = vpop.permute.xlu0 %126
    %130 = vset.pattern.permute.xlu0 0
    %131 = vperm.xlu0 %130, %v108
    %v132 = vpop.permute.xlu0 %131
    %135 = vset.pattern.permute.xlu0 0
    %136 = vperm.xlu0 %135, %v109
    %v137 = vpop.permute.xlu0 %136
    %140 = vset.pattern.permute.xlu0 0
    %141 = vperm.xlu0 %140, %v110
    %v142 = vpop.permute.xlu0 %141
    %145 = vset.pattern.permute.xlu0 0
    %146 = vperm.xlu0 %145, %v111
    %v147 = vpop.permute.xlu0 %146
    %150 = vset.pattern.permute.xlu0 0
    %151 = vperm.xlu0 %150, %v112
    %v152 = vpop.permute.xlu0 %151
    %155 = vset.pattern.permute.xlu0 0
    %156 = vperm.xlu0 %155, %v113
    %v157 = vpop.permute.xlu0 %156
    %160 = vset.pattern.permute.xlu0 0
    %161 = vperm.xlu0 %160, %v114
    %v162 = vpop.permute.xlu0 %161
    %165 = vset.pattern.permute.xlu0 0
    %166 = vperm.xlu0 %165, %v115
    %v167 = vpop.permute.xlu0 %166
    %170 = vset.pattern.permute.xlu0 0
    %171 = vperm.xlu0 %170, %v116
    %v172 = vpop.permute.xlu0 %171
    %175 = vset.pattern.permute.xlu0 0
    %176 = vperm.xlu0 %175, %v117
    %v177 = vpop.permute.xlu0 %176
    %180 = vset.pattern.permute.xlu0 0
    %181 = vperm.xlu0 %180, %v118
    %v182 = vpop.permute.xlu0 %181
    %185 = vset.pattern.permute.xlu0 0
    %186 = vperm.xlu0 %185, %v119
    %v187 = vpop.permute.xlu0 %186
    %190 = vset.pattern.permute.xlu0 0
    %191 = vperm.xlu0 %190, %v120
    %v192 = vpop.permute.xlu0 %191
    %195 = vset.pattern.permute.xlu0 0
    %196 = vperm.xlu0 %195, %v121
    %v197 = vpop.permute.xlu0 %196
    %200 = vset.pattern.permute.xlu0 0
    %201 = vperm.xlu0 %200, %v122
    %v202 = vpop.permute.xlu0 %201
    %v204 = vlaneseq
    %v205 = vshrl.u32 %v204, 7
    %v206 = vsub.s32 0, %v205
    %v207 = vrot.slane %v123, %v206
    %v208 = vsub.f32 %v127, %v207
    %v209 = vsub.f32 %v132, %v207
    %v210 = vsub.f32 %v137, %v207
    %v211 = vsub.f32 %v142, %v207
    %v212 = vsub.f32 %v147, %v207
    %v213 = vsub.f32 %v152, %v207
    %v214 = vsub.f32 %v157, %v207
    %v215 = vsub.f32 %v162, %v207
    %v216 = vsub.f32 %v167, %v207
    %v217 = vsub.f32 %v172, %v207
    %v218 = vsub.f32 %v177, %v207
    %v219 = vsub.f32 %v182, %v207
    %v220 = vsub.f32 %v187, %v207
    %v221 = vsub.f32 %v192, %v207
    %v222 = vsub.f32 %v197, %v207
    %v223 = vsub.f32 %v202, %v207
    %v224 = vmul.f32 %v208, %v208
    %v225 = vmul.f32 %v209, %v209
    %v226 = vmul.f32 %v210, %v210
    %v227 = vmul.f32 %v211, %v211
    %v228 = vmul.f32 %v212, %v212
    %v229 = vmul.f32 %v213, %v213
    %v230 = vmul.f32 %v214, %v214
    %v231 = vmul.f32 %v215, %v215
    %v232 = vmul.f32 %v216, %v216
    %v233 = vmul.f32 %v217, %v217
    %v234 = vmul.f32 %v218, %v218
    %v235 = vmul.f32 %v219, %v219
    %v236 = vmul.f32 %v220, %v220
    %v237 = vmul.f32 %v221, %v221
    %v238 = vmul.f32 %v222, %v222
    %v239 = vmul.f32 %v223, %v223
    %240 = vset.pattern.permute.xlu0 1
    %241 = vperm.xlu0 %240, %v107
    %v242 = vpop.permute.xlu0 %241
    %244 = vset.pattern.permute.xlu0 1
    %245 = vperm.xlu0 %244, %v108
    %v246 = vpop.permute.xlu0 %245
    %248 = vset.pattern.permute.xlu0 1
    %249 = vperm.xlu0 %248, %v109
    %v250 = vpop.permute.xlu0 %249
    %252 = vset.pattern.permute.xlu0 1
    %253 = vperm.xlu0 %252, %v110
    %v254 = vpop.permute.xlu0 %253
    %256 = vset.pattern.permute.xlu0 1
    %257 = vperm.xlu0 %256, %v111
    %v258 = vpop.permute.xlu0 %257
    %260 = vset.pattern.permute.xlu0 1
    %261 = vperm.xlu0 %260, %v112
    %v262 = vpop.permute.xlu0 %261
    %264 = vset.pattern.permute.xlu0 1
    %265 = vperm.xlu0 %264, %v113
    %v266 = vpop.permute.xlu0 %265
    %268 = vset.pattern.permute.xlu0 1
    %269 = vperm.xlu0 %268, %v114
    %v270 = vpop.permute.xlu0 %269
    %272 = vset.pattern.permute.xlu0 1
    %273 = vperm.xlu0 %272, %v115
    %v274 = vpop.permute.xlu0 %273
    %276 = vset.pattern.permute.xlu0 1
    %277 = vperm.xlu0 %276, %v116
    %v278 = vpop.permute.xlu0 %277
    %280 = vset.pattern.permute.xlu0 1
    %281 = vperm.xlu0 %280, %v117
    %v282 = vpop.permute.xlu0 %281
    %284 = vset.pattern.permute.xlu0 1
    %285 = vperm.xlu0 %284, %v118
    %v286 = vpop.permute.xlu0 %285
    %288 = vset.pattern.permute.xlu0 1
    %289 = vperm.xlu0 %288, %v119
    %v290 = vpop.permute.xlu0 %289
    %292 = vset.pattern.permute.xlu0 1
    %293 = vperm.xlu0 %292, %v120
    %v294 = vpop.permute.xlu0 %293
    %296 = vset.pattern.permute.xlu0 1
    %297 = vperm.xlu0 %296, %v121
    %v298 = vpop.permute.xlu0 %297
    %300 = vset.pattern.permute.xlu0 1
    %301 = vperm.xlu0 %300, %v122
    %v302 = vpop.permute.xlu0 %301
    %v304 = vlaneseq
    %v305 = vshrl.u32 %v304, 7
    %v306 = vsub.s32 1, %v305
    %v307 = vrot.slane %v123, %v306
    %v308 = vsub.f32 %v242, %v307
    %v309 = vsub.f32 %v246, %v307
    %v310 = vsub.f32 %v250, %v307
    %v311 = vsub.f32 %v254, %v307
    %v312 = vsub.f32 %v258, %v307
    %v313 = vsub.f32 %v262, %v307
    %v314 = vsub.f32 %v266, %v307
    %v315 = vsub.f32 %v270, %v307
    %v316 = vsub.f32 %v274, %v307
    %v317 = vsub.f32 %v278, %v307
    %v318 = vsub.f32 %v282, %v307
    %v319 = vsub.f32 %v286, %v307
    %v320 = vsub.f32 %v290, %v307
    %v321 = vsub.f32 %v294, %v307
    %v322 = vsub.f32 %v298, %v307
    %v323 = vsub.f32 %v302, %v307
    %v324 = vmul.f32 %v308, %v308
    %v325 = vmul.f32 %v309, %v309
    %v326 = vmul.f32 %v310, %v310
    %v327 = vmul.f32 %v311, %v311
    %v328 = vmul.f32 %v312, %v312
    %v329 = vmul.f32 %v313, %v313
    %v330 = vmul.f32 %v314, %v314
    %v331 = vmul.f32 %v315, %v315
    %v332 = vmul.f32 %v316, %v316
    %v333 = vmul.f32 %v317, %v317
    %v334 = vmul.f32 %v318, %v318
    %v335 = vmul.f32 %v319, %v319
    %v336 = vmul.f32 %v320, %v320
    %v337 = vmul.f32 %v321, %v321
    %v338 = vmul.f32 %v322, %v322
    %v339 = vmul.f32 %v323, %v323
    %v340 = vadd.f32 %v224, %v324
    %v341 = vadd.f32 %v225, %v325
    %v342 = vadd.f32 %v226, %v326
    %v343 = vadd.f32 %v227, %v327
    %v344 = vadd.f32 %v228, %v328
    %v345 = vadd.f32 %v229, %v329
    %v346 = vadd.f32 %v230, %v330
    %v347 = vadd.f32 %v231, %v331
    %v348 = vadd.f32 %v232, %v332
    %v349 = vadd.f32 %v233, %v333
    %v350 = vadd.f32 %v234, %v334
    %v351 = vadd.f32 %v235, %v335
    %v352 = vadd.f32 %v236, %v336
    %v353 = vadd.f32 %v237, %v337
    %v354 = vadd.f32 %v238, %v338
    %v355 = vadd.f32 %v239, %v339
    %v356 = vadd.f32 %v340, 1.0
    %v357 = vadd.f32 %v341, 1.0
    %v358 = vadd.f32 %v342, 1.0
    %v359 = vadd.f32 %v343, 1.0
    %v360 = vadd.f32 %v344, 1.0
    %v361 = vadd.f32 %v345, 1.0
    %v362 = vadd.f32 %v346, 1.0
    %v363 = vadd.f32 %v347, 1.0
    %v364 = vadd.f32 %v348, 1.0
    %v365 = vadd.f32 %v349, 1.0
    %v366 = vadd.f32 %v350, 1.0
    %v367 = vadd.f32 %v351, 1.0
    %v368 = vadd.f32 %v352, 1.0
    %v369 = vadd.f32 %v353, 1.0
    %v370 = vadd.f32 %v354, 1.0
    %v371 = vadd.f32 %v355, 1.0
    %v372 = vld [vmem:[#allocation2] sm:$0xff]
    %v373 = vld [vmem:[#allocation2 + $0x8] sm:$0xff]
    %v374 = vld [vmem:[#allocation2 + $0x10] sm:$0xff]
    %v375 = vld [vmem:[#allocation2 + $0x18] sm:$0xff]
    %v376 = vld [vmem:[#allocation2 + $0x20] sm:$0xff]
    %v377 = vld [vmem:[#allocation2 + $0x28] sm:$0xff]
    %v378 = vld [vmem:[#allocation2 + $0x30] sm:$0xff]
    %v379 = vld [vmem:[#allocation2 + $0x38] sm:$0xff]
    %v380 = vld [vmem:[#allocation2 + $0x40] sm:$0xff]
    %v381 = vld [vmem:[#allocation2 + $0x48] sm:$0xff]
    %v382 = vld [vmem:[#allocation2 + $0x50] sm:$0xff]
    %v383 = vld [vmem:[#allocation2 + $0x58] sm:$0xff]
    %v384 = vld [vmem:[#allocation2 + $0x60] sm:$0xff]
    %v385 = vld [vmem:[#allocation2 + $0x68] sm:$0xff]
    %v386 = vld [vmem:[#allocation2 + $0x70] sm:$0xff]
    %v387 = vld [vmem:[#allocation2 + $0x78] sm:$0xff]
    %v388 = vrcp.pop %v356
    %v389 = vrcp.pop %v357
    %v390 = vrcp.pop %v358
    %v391 = vrcp.pop %v359
    %v392 = vrcp.pop %v360
    %v393 = vrcp.pop %v361
    %v394 = vrcp.pop %v362
    %v395 = vrcp.pop %v363
    %v396 = vrcp.pop %v364
    %v397 = vrcp.pop %v365
    %v398 = vrcp.pop %v366
    %v399 = vrcp.pop %v367
    %v400 = vrcp.pop %v368
    %v401 = vrcp.pop %v369
    %v402 = vrcp.pop %v370
    %v403 = vrcp.pop %v371
    %v404 = vadd.f32 %v372, %v388
    %v405 = vadd.f32 %v373, %v389
    %v406 = vadd.f32 %v374, %v390
    %v407 = vadd.f32 %v375, %v391
    %v408 = vadd.f32 %v376, %v392
    %v409 = vadd.f32 %v377, %v393
    %v410 = vadd.f32 %v378, %v394
    %v411 = vadd.f32 %v379, %v395
    %v412 = vadd.f32 %v380, %v396
    %v413 = vadd.f32 %v381, %v397
    %v414 = vadd.f32 %v382, %v398
    %v415 = vadd.f32 %v383, %v399
    %v416 = vadd.f32 %v384, %v400
    %v417 = vadd.f32 %v385, %v401
    %v418 = vadd.f32 %v386, %v402
    %v419 = vadd.f32 %v387, %v403
    %420 = vst [vmem:[#allocation2] sm:$0xff] %v404
    %421 = vst [vmem:[#allocation2 + $0x8] sm:$0xff] %v405
    %422 = vst [vmem:[#allocation2 + $0x10] sm:$0xff] %v406
    %423 = vst [vmem:[#allocation2 + $0x18] sm:$0xff] %v407
    %424 = vst [vmem:[#allocation2 + $0x20] sm:$0xff] %v408
    %425 = vst [vmem:[#allocation2 + $0x28] sm:$0xff] %v409
    %426 = vst [vmem:[#allocation2 + $0x30] sm:$0xff] %v410
    %427 = vst [vmem:[#allocation2 + $0x38] sm:$0xff] %v411
    %428 = vst [vmem:[#allocation2 + $0x40] sm:$0xff] %v412
    %429 = vst [vmem:[#allocation2 + $0x48] sm:$0xff] %v413
    %430 = vst [vmem:[#allocation2 + $0x50] sm:$0xff] %v414
    %431 = vst [vmem:[#allocation2 + $0x58] sm:$0xff] %v415
    %432 = vst [vmem:[#allocation2 + $0x60] sm:$0xff] %v416
    %433 = vst [vmem:[#allocation2 + $0x68] sm:$0xff] %v417
    %434 = vst [vmem:[#allocation2 + $0x70] sm:$0xff] %v418
    %435 = vst [vmem:[#allocation2 + $0x78] sm:$0xff] %v419
    %v436 = vld [vmem:[#allocation7] sm:$0xff]
    %v437 = vld [vmem:[#allocation7 + $0x8] sm:$0xff]
    %v438 = vld [vmem:[#allocation7 + $0x10] sm:$0xff]
    %v439 = vld [vmem:[#allocation7 + $0x18] sm:$0xff]
    %v440 = vld [vmem:[#allocation7 + $0x20] sm:$0xff]
    %v441 = vld [vmem:[#allocation7 + $0x28] sm:$0xff]
    %v442 = vld [vmem:[#allocation7 + $0x30] sm:$0xff]
    %v443 = vld [vmem:[#allocation7 + $0x38] sm:$0xff]
    %v444 = vld [vmem:[#allocation7 + $0x40] sm:$0xff]
    %v445 = vld [vmem:[#allocation7 + $0x48] sm:$0xff]
    %v446 = vld [vmem:[#allocation7 + $0x50] sm:$0xff]
    %v447 = vld [vmem:[#allocation7 + $0x58] sm:$0xff]
    %v448 = vld [vmem:[#allocation7 + $0x60] sm:$0xff]
    %v449 = vld [vmem:[#allocation7 + $0x68] sm:$0xff]
    %v450 = vld [vmem:[#allocation7 + $0x70] sm:$0xff]
    %v451 = vld [vmem:[#allocation7 + $0x78] sm:$0xff]
    %v452 = vld [vmem:[#allocation9] sm:$0xff]
    %v453 = vld [vmem:[#allocation9 + $0x8] sm:$0xff]
    %v454 = vld [vmem:[#allocation9 + $0x10] sm:$0xff]
    %v455 = vld [vmem:[#allocation9 + $0x18] sm:$0xff]
    %v456 = vld [vmem:[#allocation9 + $0x20] sm:$0xff]
    %v457 = vld [vmem:[#allocation9 + $0x28] sm:$0xff]
    %v458 = vld [vmem:[#allocation9 + $0x30] sm:$0xff]
    %v459 = vld [vmem:[#allocation9 + $0x38] sm:$0xff]
    %v460 = vld [vmem:[#allocation9 + $0x40] sm:$0xff]
    %v461 = vld [vmem:[#allocation9 + $0x48] sm:$0xff]
    %v462 = vld [vmem:[#allocation9 + $0x50] sm:$0xff]
    %v463 = vld [vmem:[#allocation9 + $0x58] sm:$0xff]
    %v464 = vld [vmem:[#allocation9 + $0x60] sm:$0xff]
    %v465 = vld [vmem:[#allocation9 + $0x68] sm:$0xff]
    %v466 = vld [vmem:[#allocation9 + $0x70] sm:$0xff]
    %v467 = vld [vmem:[#allocation9 + $0x78] sm:$0xff]
    %468 = vxpose.xlu0.b32.start [1/16] %v452, 128
    %469 = vxpose.xlu0.b32.cont [2/16] %v453, 128
    %470 = vxpose.xlu0.b32.cont [3/16] %v454, 128
    %471 = vxpose.xlu0.b32.cont [4/16] %v455, 128
    %472 = vxpose.xlu0.b32.cont [5/16] %v456, 128
    %473 = vxpose.xlu0.b32.cont [6/16] %v457, 128
    %474 = vxpose.xlu0.b32.cont [7/16] %v458, 128
    %475 = vxpose.xlu0.b32.cont [8/16] %v459, 128
    %476 = vxpose.xlu0.b32.cont [9/16] %v460, 128
    %477 = vxpose.xlu0.b32.cont [10/16] %v461, 128
    %478 = vxpose.xlu0.b32.cont [11/16] %v462, 128
    %479 = vxpose.xlu0.b32.cont [12/16] %v463, 128
    %480 = vxpose.xlu0.b32.cont [13/16] %v464, 128
    %481 = vxpose.xlu0.b32.cont [14/16] %v465, 128
    %482 = vxpose.xlu0.b32.cont [15/16] %v466, 128
    %483 = vxpose.xlu0.b32.end [16/16] %v467, 128
    %v484 = vpop.trf.xlu0
    %v485 = vpop.trf.xlu0
    %v486 = vpop.trf.xlu0
    %v487 = vpop.trf.xlu0
    %v488 = vpop.trf.xlu0
    %v489 = vpop.trf.xlu0
    %v490 = vpop.trf.xlu0
    %v491 = vpop.trf.xlu0
    %v492 = vpop.trf.xlu0
    %v493 = vpop.trf.xlu0
    %v494 = vpop.trf.xlu0
    %v495 = vpop.trf.xlu0
    %v496 = vpop.trf.xlu0
    %v497 = vpop.trf.xlu0
    %v498 = vpop.trf.xlu0
    %v499 = vpop.trf.xlu0
    %v500 = vadd.f32 %v436, %v484
    %v501 = vadd.f32 %v437, %v485
    %v502 = vadd.f32 %v438, %v486
    %v503 = vadd.f32 %v439, %v487
    %v504 = vadd.f32 %v440, %v488
    %v505 = vadd.f32 %v441, %v489
    %v506 = vadd.f32 %v442, %v490
    %v507 = vadd.f32 %v443, %v491
    %v508 = vadd.f32 %v444, %v492
    %v509 = vadd.f32 %v445, %v493
    %v510 = vadd.f32 %v446, %v494
    %v511 = vadd.f32 %v447, %v495
    %v512 = vadd.f32 %v448, %v496
    %v513 = vadd.f32 %v449, %v497
    %v514 = vadd.f32 %v450, %v498
    %v515 = vadd.f32 %v451, %v499
    %s516 = sld [smem:[#allocation6]]
    %v517 = vstv %s516
    %v518 = vmul.f32 %v500, %v517
    %v519 = vmul.f32 %v501, %v517
    %v520 = vmul.f32 %v502, %v517
    %v521 = vmul.f32 %v503, %v517
    %v522 = vmul.f32 %v504, %v517
    %v523 = vmul.f32 %v505, %v517
    %v524 = vmul.f32 %v506, %v517
    %v525 = vmul.f32 %v507, %v517
    %v526 = vmul.f32 %v508, %v517
    %v527 = vmul.f32 %v509, %v517
    %v528 = vmul.f32 %v510, %v517
    %v529 = vmul.f32 %v511, %v517
    %v530 = vmul.f32 %v512, %v517
    %v531 = vmul.f32 %v513, %v517
    %v532 = vmul.f32 %v514, %v517
    %v533 = vmul.f32 %v515, %v517
    %vm534 = vcmp.gt.f32.partialorder %v518, 0.0
    %vm535 = vcmp.gt.f32.partialorder %v519, 0.0
    %vm536 = vcmp.gt.f32.partialorder %v520, 0.0
    %vm537 = vcmp.gt.f32.partialorder %v521, 0.0
    %vm538 = vcmp.gt.f32.partialorder %v522, 0.0
    %vm539 = vcmp.gt.f32.partialorder %v523, 0.0
    %vm540 = vcmp.gt.f32.partialorder %v524, 0.0
    %vm541 = vcmp.gt.f32.partialorder %v525, 0.0
    %vm542 = vcmp.gt.f32.partialorder %v526, 0.0
    %vm543 = vcmp.gt.f32.partialorder %v527, 0.0
    %vm544 = vcmp.gt.f32.partialorder %v528, 0.0
    %vm545 = vcmp.gt.f32.partialorder %v529, 0.0
    %vm546 = vcmp.gt.f32.partialorder %v530, 0.0
    %vm547 = vcmp.gt.f32.partialorder %v531, 0.0
    %vm548 = vcmp.gt.f32.partialorder %v532, 0.0
    %vm549 = vcmp.gt.f32.partialorder %v533, 0.0
    %v550 = vsel %vm534, %v518, 2.220446e-16
    %v551 = vsel %vm535, %v519, 2.220446e-16
    %v552 = vsel %vm536, %v520, 2.220446e-16
    %v553 = vsel %vm537, %v521, 2.220446e-16
    %v554 = vsel %vm538, %v522, 2.220446e-16
    %v555 = vsel %vm539, %v523, 2.220446e-16
    %v556 = vsel %vm540, %v524, 2.220446e-16
    %v557 = vsel %vm541, %v525, 2.220446e-16
    %v558 = vsel %vm542, %v526, 2.220446e-16
    %v559 = vsel %vm543, %v527, 2.220446e-16
    %v560 = vsel %vm544, %v528, 2.220446e-16
    %v561 = vsel %vm545, %v529, 2.220446e-16
    %v562 = vsel %vm546, %v530, 2.220446e-16
    %v563 = vsel %vm547, %v531, 2.220446e-16
    %v564 = vsel %vm548, %v532, 2.220446e-16
    %v565 = vsel %vm549, %v533, 2.220446e-16
    %s566 = sld [smem:[#allocation6 + $0x1]]
    %v567 = vstv %s566
    %v568 = vmul.f32 %v550, %v567
    %v569 = vmul.f32 %v551, %v567
    %v570 = vmul.f32 %v552, %v567
    %v571 = vmul.f32 %v553, %v567
    %v572 = vmul.f32 %v554, %v567
    %v573 = vmul.f32 %v555, %v567
    %v574 = vmul.f32 %v556, %v567
    %v575 = vmul.f32 %v557, %v567
    %v576 = vmul.f32 %v558, %v567
    %v577 = vmul.f32 %v559, %v567
    %v578 = vmul.f32 %v560, %v567
    %v579 = vmul.f32 %v561, %v567
    %v580 = vmul.f32 %v562, %v567
    %v581 = vmul.f32 %v563, %v567
    %v582 = vmul.f32 %v564, %v567
    %v583 = vmul.f32 %v565, %v567
    %v584 = vld [vmem:[#allocation3] sm:$0xff]
    %v585 = vld [vmem:[#allocation3 + $0x8] sm:$0xff]
    %v586 = vld [vmem:[#allocation3 + $0x10] sm:$0xff]
    %v587 = vld [vmem:[#allocation3 + $0x18] sm:$0xff]
    %v588 = vld [vmem:[#allocation3 + $0x20] sm:$0xff]
    %v589 = vld [vmem:[#allocation3 + $0x28] sm:$0xff]
    %v590 = vld [vmem:[#allocation3 + $0x30] sm:$0xff]
    %v591 = vld [vmem:[#allocation3 + $0x38] sm:$0xff]
    %v592 = vld [vmem:[#allocation3 + $0x40] sm:$0xff]
    %v593 = vld [vmem:[#allocation3 + $0x48] sm:$0xff]
    %v594 = vld [vmem:[#allocation3 + $0x50] sm:$0xff]
    %v595 = vld [vmem:[#allocation3 + $0x58] sm:$0xff]
    %v596 = vld [vmem:[#allocation3 + $0x60] sm:$0xff]
    %v597 = vld [vmem:[#allocation3 + $0x68] sm:$0xff]
    %v598 = vld [vmem:[#allocation3 + $0x70] sm:$0xff]
    %v599 = vld [vmem:[#allocation3 + $0x78] sm:$0xff]
    %v600 = vmul.f32 %v568, %v356
    %v601 = vmul.f32 %v569, %v357
    %v602 = vmul.f32 %v570, %v358
    %v603 = vmul.f32 %v571, %v359
    %v604 = vmul.f32 %v572, %v360
    %v605 = vmul.f32 %v573, %v361
    %v606 = vmul.f32 %v574, %v362
    %v607 = vmul.f32 %v575, %v363
    %v608 = vmul.f32 %v576, %v364
    %v609 = vmul.f32 %v577, %v365
    %v610 = vmul.f32 %v578, %v366
    %v611 = vmul.f32 %v579, %v367
    %v612 = vmul.f32 %v580, %v368
    %v613 = vmul.f32 %v581, %v369
    %v614 = vmul.f32 %v582, %v370
    %v615 = vmul.f32 %v583, %v371
    %v616 = vlog2.pop %v600
    %v617 = vmul.f32 %v616, 0.6931472
    %v618 = vlog2.pop %v601
    %v619 = vmul.f32 %v618, 0.6931472
    %v620 = vlog2.pop %v602
    %v621 = vmul.f32 %v620, 0.6931472
    %v622 = vlog2.pop %v603
    %v623 = vmul.f32 %v622, 0.6931472
    %v624 = vlog2.pop %v604
    %v625 = vmul.f32 %v624, 0.6931472
    %v626 = vlog2.pop %v605
    %v627 = vmul.f32 %v626, 0.6931472
    %v628 = vlog2.pop %v606
    %v629 = vmul.f32 %v628, 0.6931472
    %v630 = vlog2.pop %v607
    %v631 = vmul.f32 %v630, 0.6931472
    %v632 = vlog2.pop %v608
    %v633 = vmul.f32 %v632, 0.6931472
    %v634 = vlog2.pop %v609
    %v635 = vmul.f32 %v634, 0.6931472
    %v636 = vlog2.pop %v610
    %v637 = vmul.f32 %v636, 0.6931472
    %v638 = vlog2.pop %v611
    %v639 = vmul.f32 %v638, 0.6931472
    %v640 = vlog2.pop %v612
    %v641 = vmul.f32 %v640, 0.6931472
    %v642 = vlog2.pop %v613
    %v643 = vmul.f32 %v642, 0.6931472
    %v644 = vlog2.pop %v614
    %v645 = vmul.f32 %v644, 0.6931472
    %v646 = vlog2.pop %v615
    %v647 = vmul.f32 %v646, 0.6931472
    %v648 = vmul.f32 %v568, %v617
    %v649 = vmul.f32 %v569, %v619
    %v650 = vmul.f32 %v570, %v621
    %v651 = vmul.f32 %v571, %v623
    %v652 = vmul.f32 %v572, %v625
    %v653 = vmul.f32 %v573, %v627
    %v654 = vmul.f32 %v574, %v629
    %v655 = vmul.f32 %v575, %v631
    %v656 = vmul.f32 %v576, %v633
    %v657 = vmul.f32 %v577, %v635
    %v658 = vmul.f32 %v578, %v637
    %v659 = vmul.f32 %v579, %v639
    %v660 = vmul.f32 %v580, %v641
    %v661 = vmul.f32 %v581, %v643
    %v662 = vmul.f32 %v582, %v645
    %v663 = vmul.f32 %v583, %v647
    %v664 = vadd.f32 %v584, %v648
    %v665 = vadd.f32 %v585, %v649
    %v666 = vadd.f32 %v586, %v650
    %v667 = vadd.f32 %v587, %v651
    %v668 = vadd.f32 %v588, %v652
    %v669 = vadd.f32 %v589, %v653
    %v670 = vadd.f32 %v590, %v654
    %v671 = vadd.f32 %v591, %v655
    %v672 = vadd.f32 %v592, %v656
    %v673 = vadd.f32 %v593, %v657
    %v674 = vadd.f32 %v594, %v658
    %v675 = vadd.f32 %v595, %v659
    %v676 = vadd.f32 %v596, %v660
    %v677 = vadd.f32 %v597, %v661
    %v678 = vadd.f32 %v598, %v662
    %v679 = vadd.f32 %v599, %v663
    %680 = vst [vmem:[#allocation3] sm:$0xff] %v664
    %681 = vst [vmem:[#allocation3 + $0x8] sm:$0xff] %v665
    %682 = vst [vmem:[#allocation3 + $0x10] sm:$0xff] %v666
    %683 = vst [vmem:[#allocation3 + $0x18] sm:$0xff] %v667
    %684 = vst [vmem:[#allocation3 + $0x20] sm:$0xff] %v668
    %685 = vst [vmem:[#allocation3 + $0x28] sm:$0xff] %v669
    %686 = vst [vmem:[#allocation3 + $0x30] sm:$0xff] %v670
    %687 = vst [vmem:[#allocation3 + $0x38] sm:$0xff] %v671
    %688 = vst [vmem:[#allocation3 + $0x40] sm:$0xff] %v672
    %689 = vst [vmem:[#allocation3 + $0x48] sm:$0xff] %v673
    %690 = vst [vmem:[#allocation3 + $0x50] sm:$0xff] %v674
    %691 = vst [vmem:[#allocation3 + $0x58] sm:$0xff] %v675
    %692 = vst [vmem:[#allocation3 + $0x60] sm:$0xff] %v676
    %693 = vst [vmem:[#allocation3 + $0x68] sm:$0xff] %v677
    %694 = vst [vmem:[#allocation3 + $0x70] sm:$0xff] %v678
    %695 = vst [vmem:[#allocation3 + $0x78] sm:$0xff] %v679
    %v696 = vld [vmem:[#allocation4] sm:$0xff]
    %v697 = vld [vmem:[#allocation4 + $0x8] sm:$0xff]
    %v698 = vld [vmem:[#allocation4 + $0x10] sm:$0xff]
    %v699 = vld [vmem:[#allocation4 + $0x18] sm:$0xff]
    %v700 = vld [vmem:[#allocation4 + $0x20] sm:$0xff]
    %v701 = vld [vmem:[#allocation4 + $0x28] sm:$0xff]
    %v702 = vld [vmem:[#allocation4 + $0x30] sm:$0xff]
    %v703 = vld [vmem:[#allocation4 + $0x38] sm:$0xff]
    %v704 = vld [vmem:[#allocation4 + $0x40] sm:$0xff]
    %v705 = vld [vmem:[#allocation4 + $0x48] sm:$0xff]
    %v706 = vld [vmem:[#allocation4 + $0x50] sm:$0xff]
    %v707 = vld [vmem:[#allocation4 + $0x58] sm:$0xff]
    %v708 = vld [vmem:[#allocation4 + $0x60] sm:$0xff]
    %v709 = vld [vmem:[#allocation4 + $0x68] sm:$0xff]
    %v710 = vld [vmem:[#allocation4 + $0x70] sm:$0xff]
    %v711 = vld [vmem:[#allocation4 + $0x78] sm:$0xff]
    %v712 = vadd.f32 %v696, %v568
    %v713 = vadd.f32 %v697, %v569
    %v714 = vadd.f32 %v698, %v570
    %v715 = vadd.f32 %v699, %v571
    %v716 = vadd.f32 %v700, %v572
    %v717 = vadd.f32 %v701, %v573
    %v718 = vadd.f32 %v702, %v574
    %v719 = vadd.f32 %v703, %v575
    %v720 = vadd.f32 %v704, %v576
    %v721 = vadd.f32 %v705, %v577
    %v722 = vadd.f32 %v706, %v578
    %v723 = vadd.f32 %v707, %v579
    %v724 = vadd.f32 %v708, %v580
    %v725 = vadd.f32 %v709, %v581
    %v726 = vadd.f32 %v710, %v582
    %v727 = vadd.f32 %v711, %v583
    %728 = vst [vmem:[#allocation4] sm:$0xff] %v712
    %729 = vst [vmem:[#allocation4 + $0x8] sm:$0xff] %v713
    %730 = vst [vmem:[#allocation4 + $0x10] sm:$0xff] %v714
    %731 = vst [vmem:[#allocation4 + $0x18] sm:$0xff] %v715
    %732 = vst [vmem:[#allocation4 + $0x20] sm:$0xff] %v716
    %733 = vst [vmem:[#allocation4 + $0x28] sm:$0xff] %v717
    %734 = vst [vmem:[#allocation4 + $0x30] sm:$0xff] %v718
    %735 = vst [vmem:[#allocation4 + $0x38] sm:$0xff] %v719
    %736 = vst [vmem:[#allocation4 + $0x40] sm:$0xff] %v720
    %737 = vst [vmem:[#allocation4 + $0x48] sm:$0xff] %v721
    %738 = vst [vmem:[#allocation4 + $0x50] sm:$0xff] %v722
    %739 = vst [vmem:[#allocation4 + $0x58] sm:$0xff] %v723
    %740 = vst [vmem:[#allocation4 + $0x60] sm:$0xff] %v724
    %741 = vst [vmem:[#allocation4 + $0x68] sm:$0xff] %v725
    %742 = vst [vmem:[#allocation4 + $0x70] sm:$0xff] %v726
    %743 = vst [vmem:[#allocation4 + $0x78] sm:$0xff] %v727
    %s744 = smul.u32 0, 128
    %s745 = smul.u32 0, 128
    %s746 = sadd.s32 %s745, 128
    %p747 = scmp.lt.s32.totalorder %s744, %s746
    %s748 = sadd.s32 %s744, 128
    %p749 = scmp.lt.s32.totalorder %s745, %s748
    %p750 = pnand %p747, %p749
    %p751 = pneg %p750
    // Predicated region
    $region30: #{_lambda_.3} parent=1 // pred_check
      _
    $region31: #{_lambda_.3} parent=1 // pred_check_branch
      %753 = sbr.rel (%p750) target = $region33
    $region32: #{_lambda_.3} parent=1 // pred_region
      %v754 = vlaneseq
      %v755 = vshrl.u32 %v754, 7
      %v756 = vadd.s32 %v755, 8
      %v757 = vadd.s32 %v755, 16
      %v758 = vadd.s32 %v755, 24
      %v759 = vadd.s32 %v755, 32
      %v760 = vadd.s32 %v755, 40
      %v761 = vadd.s32 %v755, 48
      %v762 = vadd.s32 %v755, 56
      %v763 = vadd.s32 %v755, 64
      %v764 = vadd.s32 %v755, 72
      %v765 = vadd.s32 %v755, 80
      %v766 = vadd.s32 %v755, 88
      %v767 = vadd.s32 %v755, 96
      %v768 = vadd.s32 %v755, 104
      %v769 = vadd.s32 %v755, 112
      %v770 = vadd.s32 %v755, 120
      %v771 = vstv %s744
      %v772 = vadd.s32 %v771, %v755
      %v773 = vadd.s32 %v771, %v756
      %v774 = vadd.s32 %v771, %v757
      %v775 = vadd.s32 %v771, %v758
      %v776 = vadd.s32 %v771, %v759
      %v777 = vadd.s32 %v771, %v760
      %v778 = vadd.s32 %v771, %v761
      %v779 = vadd.s32 %v771, %v762
      %v780 = vadd.s32 %v771, %v763
      %v781 = vadd.s32 %v771, %v764
      %v782 = vadd.s32 %v771, %v765
      %v783 = vadd.s32 %v771, %v766
      %v784 = vadd.s32 %v771, %v767
      %v785 = vadd.s32 %v771, %v768
      %v786 = vadd.s32 %v771, %v769
      %v787 = vadd.s32 %v771, %v770
      %v788 = vlaneseq
      %v789 = vand.u32 %v788, 127
      %v790 = vstv %s745
      %v791 = vadd.s32 %v790, %v789
      %vm792 = vcmp.eq.s32.totalorder %v772, %v791
      %vm793 = vcmp.eq.s32.totalorder %v773, %v791
      %vm794 = vcmp.eq.s32.totalorder %v774, %v791
      %vm795 = vcmp.eq.s32.totalorder %v775, %v791
      %vm796 = vcmp.eq.s32.totalorder %v776, %v791
      %vm797 = vcmp.eq.s32.totalorder %v777, %v791
      %vm798 = vcmp.eq.s32.totalorder %v778, %v791
      %vm799 = vcmp.eq.s32.totalorder %v779, %v791
      %vm800 = vcmp.eq.s32.totalorder %v780, %v791
      %vm801 = vcmp.eq.s32.totalorder %v781, %v791
      %vm802 = vcmp.eq.s32.totalorder %v782, %v791
      %vm803 = vcmp.eq.s32.totalorder %v783, %v791
      %vm804 = vcmp.eq.s32.totalorder %v784, %v791
      %vm805 = vcmp.eq.s32.totalorder %v785, %v791
      %vm806 = vcmp.eq.s32.totalorder %v786, %v791
      %vm807 = vcmp.eq.s32.totalorder %v787, %v791
      %v808 = vld [vmem:[#allocation3] sm:$0xff]
      %v809 = vld [vmem:[#allocation3 + $0x8] sm:$0xff]
      %v810 = vld [vmem:[#allocation3 + $0x10] sm:$0xff]
      %v811 = vld [vmem:[#allocation3 + $0x18] sm:$0xff]
      %v812 = vld [vmem:[#allocation3 + $0x20] sm:$0xff]
      %v813 = vld [vmem:[#allocation3 + $0x28] sm:$0xff]
      %v814 = vld [vmem:[#allocation3 + $0x30] sm:$0xff]
      %v815 = vld [vmem:[#allocation3 + $0x38] sm:$0xff]
      %v816 = vld [vmem:[#allocation3 + $0x40] sm:$0xff]
      %v817 = vld [vmem:[#allocation3 + $0x48] sm:$0xff]
      %v818 = vld [vmem:[#allocation3 + $0x50] sm:$0xff]
      %v819 = vld [vmem:[#allocation3 + $0x58] sm:$0xff]
      %v820 = vld [vmem:[#allocation3 + $0x60] sm:$0xff]
      %v821 = vld [vmem:[#allocation3 + $0x68] sm:$0xff]
      %v822 = vld [vmem:[#allocation3 + $0x70] sm:$0xff]
      %v823 = vld [vmem:[#allocation3 + $0x78] sm:$0xff]
      %v824 = vmul.f32 %v568, 36.04365
      %v825 = vmul.f32 %v569, 36.04365
      %v826 = vmul.f32 %v570, 36.04365
      %v827 = vmul.f32 %v571, 36.04365
      %v828 = vmul.f32 %v572, 36.04365
      %v829 = vmul.f32 %v573, 36.04365
      %v830 = vmul.f32 %v574, 36.04365
      %v831 = vmul.f32 %v575, 36.04365
      %v832 = vmul.f32 %v576, 36.04365
      %v833 = vmul.f32 %v577, 36.04365
      %v834 = vmul.f32 %v578, 36.04365
      %v835 = vmul.f32 %v579, 36.04365
      %v836 = vmul.f32 %v580, 36.04365
      %v837 = vmul.f32 %v581, 36.04365
      %v838 = vmul.f32 %v582, 36.04365
      %v839 = vmul.f32 %v583, 36.04365
      %v840 = vsel %vm792, %v824, 0.0
      %v841 = vsel %vm793, %v825, 0.0
      %v842 = vsel %vm794, %v826, 0.0
      %v843 = vsel %vm795, %v827, 0.0
      %v844 = vsel %vm796, %v828, 0.0
      %v845 = vsel %vm797, %v829, 0.0
      %v846 = vsel %vm798, %v830, 0.0
      %v847 = vsel %vm799, %v831, 0.0
      %v848 = vsel %vm800, %v832, 0.0
      %v849 = vsel %vm801, %v833, 0.0
      %v850 = vsel %vm802, %v834, 0.0
      %v851 = vsel %vm803, %v835, 0.0
      %v852 = vsel %vm804, %v836, 0.0
      %v853 = vsel %vm805, %v837, 0.0
      %v854 = vsel %vm806, %v838, 0.0
      %v855 = vsel %vm807, %v839, 0.0
      %v856 = vadd.f32 %v808, %v840
      %v857 = vadd.f32 %v809, %v841
      %v858 = vadd.f32 %v810, %v842
      %v859 = vadd.f32 %v811, %v843
      %v860 = vadd.f32 %v812, %v844
      %v861 = vadd.f32 %v813, %v845
      %v862 = vadd.f32 %v814, %v846
      %v863 = vadd.f32 %v815, %v847
      %v864 = vadd.f32 %v816, %v848
      %v865 = vadd.f32 %v817, %v849
      %v866 = vadd.f32 %v818, %v850
      %v867 = vadd.f32 %v819, %v851
      %v868 = vadd.f32 %v820, %v852
      %v869 = vadd.f32 %v821, %v853
      %v870 = vadd.f32 %v822, %v854
      %v871 = vadd.f32 %v823, %v855
      %872 = vst [vmem:[#allocation3] sm:$0xff] %v856
      %873 = vst [vmem:[#allocation3 + $0x8] sm:$0xff] %v857
      %874 = vst [vmem:[#allocation3 + $0x10] sm:$0xff] %v858
      %875 = vst [vmem:[#allocation3 + $0x18] sm:$0xff] %v859
      %876 = vst [vmem:[#allocation3 + $0x20] sm:$0xff] %v860
      %877 = vst [vmem:[#allocation3 + $0x28] sm:$0xff] %v861
      %878 = vst [vmem:[#allocation3 + $0x30] sm:$0xff] %v862
      %879 = vst [vmem:[#allocation3 + $0x38] sm:$0xff] %v863
      %880 = vst [vmem:[#allocation3 + $0x40] sm:$0xff] %v864
      %881 = vst [vmem:[#allocation3 + $0x48] sm:$0xff] %v865
      %882 = vst [vmem:[#allocation3 + $0x50] sm:$0xff] %v866
      %883 = vst [vmem:[#allocation3 + $0x58] sm:$0xff] %v867
      %884 = vst [vmem:[#allocation3 + $0x60] sm:$0xff] %v868
      %885 = vst [vmem:[#allocation3 + $0x68] sm:$0xff] %v869
      %886 = vst [vmem:[#allocation3 + $0x70] sm:$0xff] %v870
      %887 = vst [vmem:[#allocation3 + $0x78] sm:$0xff] %v871
      %v888 = vld [vmem:[#allocation4] sm:$0xff]
      %v889 = vld [vmem:[#allocation4 + $0x8] sm:$0xff]
      %v890 = vld [vmem:[#allocation4 + $0x10] sm:$0xff]
      %v891 = vld [vmem:[#allocation4 + $0x18] sm:$0xff]
      %v892 = vld [vmem:[#allocation4 + $0x20] sm:$0xff]
      %v893 = vld [vmem:[#allocation4 + $0x28] sm:$0xff]
      %v894 = vld [vmem:[#allocation4 + $0x30] sm:$0xff]
      %v895 = vld [vmem:[#allocation4 + $0x38] sm:$0xff]
      %v896 = vld [vmem:[#allocation4 + $0x40] sm:$0xff]
      %v897 = vld [vmem:[#allocation4 + $0x48] sm:$0xff]
      %v898 = vld [vmem:[#allocation4 + $0x50] sm:$0xff]
      %v899 = vld [vmem:[#allocation4 + $0x58] sm:$0xff]
      %v900 = vld [vmem:[#allocation4 + $0x60] sm:$0xff]
      %v901 = vld [vmem:[#allocation4 + $0x68] sm:$0xff]
      %v902 = vld [vmem:[#allocation4 + $0x70] sm:$0xff]
      %v903 = vld [vmem:[#allocation4 + $0x78] sm:$0xff]
      %v904 = vsub.f32 0.0, %v568
      %v905 = vsub.f32 0.0, %v569
      %v906 = vsub.f32 0.0, %v570
      %v907 = vsub.f32 0.0, %v571
      %v908 = vsub.f32 0.0, %v572
      %v909 = vsub.f32 0.0, %v573
      %v910 = vsub.f32 0.0, %v574
      %v911 = vsub.f32 0.0, %v575
      %v912 = vsub.f32 0.0, %v576
      %v913 = vsub.f32 0.0, %v577
      %v914 = vsub.f32 0.0, %v578
      %v915 = vsub.f32 0.0, %v579
      %v916 = vsub.f32 0.0, %v580
      %v917 = vsub.f32 0.0, %v581
      %v918 = vsub.f32 0.0, %v582
      %v919 = vsub.f32 0.0, %v583
      %v920 = vsel %vm792, %v904, 0.0
      %v921 = vsel %vm793, %v905, 0.0
      %v922 = vsel %vm794, %v906, 0.0
      %v923 = vsel %vm795, %v907, 0.0
      %v924 = vsel %vm796, %v908, 0.0
      %v925 = vsel %vm797, %v909, 0.0
      %v926 = vsel %vm798, %v910, 0.0
      %v927 = vsel %vm799, %v911, 0.0
      %v928 = vsel %vm800, %v912, 0.0
      %v929 = vsel %vm801, %v913, 0.0
      %v930 = vsel %vm802, %v914, 0.0
      %v931 = vsel %vm803, %v915, 0.0
      %v932 = vsel %vm804, %v916, 0.0
      %v933 = vsel %vm805, %v917, 0.0
      %v934 = vsel %vm806, %v918, 0.0
      %v935 = vsel %vm807, %v919, 0.0
      %v936 = vadd.f32 %v888, %v920
      %v937 = vadd.f32 %v889, %v921
      %v938 = vadd.f32 %v890, %v922
      %v939 = vadd.f32 %v891, %v923
      %v940 = vadd.f32 %v892, %v924
      %v941 = vadd.f32 %v893, %v925
      %v942 = vadd.f32 %v894, %v926
      %v943 = vadd.f32 %v895, %v927
      %v944 = vadd.f32 %v896, %v928
      %v945 = vadd.f32 %v897, %v929
      %v946 = vadd.f32 %v898, %v930
      %v947 = vadd.f32 %v899, %v931
      %v948 = vadd.f32 %v900, %v932
      %v949 = vadd.f32 %v901, %v933
      %v950 = vadd.f32 %v902, %v934
      %v951 = vadd.f32 %v903, %v935
      %952 = vst [vmem:[#allocation4] sm:$0xff] %v936
      %953 = vst [vmem:[#allocation4 + $0x8] sm:$0xff] %v937
      %954 = vst [vmem:[#allocation4 + $0x10] sm:$0xff] %v938
      %955 = vst [vmem:[#allocation4 + $0x18] sm:$0xff] %v939
      %956 = vst [vmem:[#allocation4 + $0x20] sm:$0xff] %v940
      %957 = vst [vmem:[#allocation4 + $0x28] sm:$0xff] %v941
      %958 = vst [vmem:[#allocation4 + $0x30] sm:$0xff] %v942
      %959 = vst [vmem:[#allocation4 + $0x38] sm:$0xff] %v943
      %960 = vst [vmem:[#allocation4 + $0x40] sm:$0xff] %v944
      %961 = vst [vmem:[#allocation4 + $0x48] sm:$0xff] %v945
      %962 = vst [vmem:[#allocation4 + $0x50] sm:$0xff] %v946
      %963 = vst [vmem:[#allocation4 + $0x58] sm:$0xff] %v947
      %964 = vst [vmem:[#allocation4 + $0x60] sm:$0xff] %v948
      %965 = vst [vmem:[#allocation4 + $0x68] sm:$0xff] %v949
      %966 = vst [vmem:[#allocation4 + $0x70] sm:$0xff] %v950
      %967 = vst [vmem:[#allocation4 + $0x78] sm:$0xff] %v951
    $region33: #{_lambda_.3} parent=1 // pred_fallthru
      _
    // Predicated region
    $region34: #{_lambda_.3} parent=1 // pred_check
      %p968 = pneg %p55
    $region35: #{_lambda_.3} parent=1 // pred_check_branch
      %970 = sbr.rel (%p968) target = $region37
    $region36: #{_lambda_.3} parent=1 // pred_region
      %v971 = vld [vmem:[#allocation2] sm:$0xff]
      %v972 = vld [vmem:[#allocation2 + $0x8] sm:$0xff]
      %v973 = vld [vmem:[#allocation2 + $0x10] sm:$0xff]
      %v974 = vld [vmem:[#allocation2 + $0x18] sm:$0xff]
      %v975 = vld [vmem:[#allocation2 + $0x20] sm:$0xff]
      %v976 = vld [vmem:[#allocation2 + $0x28] sm:$0xff]
      %v977 = vld [vmem:[#allocation2 + $0x30] sm:$0xff]
      %v978 = vld [vmem:[#allocation2 + $0x38] sm:$0xff]
      %v979 = vld [vmem:[#allocation2 + $0x40] sm:$0xff]
      %v980 = vld [vmem:[#allocation2 + $0x48] sm:$0xff]
      %v981 = vld [vmem:[#allocation2 + $0x50] sm:$0xff]
      %v982 = vld [vmem:[#allocation2 + $0x58] sm:$0xff]
      %v983 = vld [vmem:[#allocation2 + $0x60] sm:$0xff]
      %v984 = vld [vmem:[#allocation2 + $0x68] sm:$0xff]
      %v985 = vld [vmem:[#allocation2 + $0x70] sm:$0xff]
      %v986 = vld [vmem:[#allocation2 + $0x78] sm:$0xff]
      %987 = vadd.xlane.f32.xlu0 %v971
      %v988 = vpop.xlane.xlu0 %987
      %989 = vadd.xlane.f32.xlu0 %v972
      %v990 = vpop.xlane.xlu0 %989
      %991 = vadd.xlane.f32.xlu0 %v973
      %v992 = vpop.xlane.xlu0 %991
      %993 = vadd.xlane.f32.xlu0 %v974
      %v994 = vpop.xlane.xlu0 %993
      %995 = vadd.xlane.f32.xlu0 %v975
      %v996 = vpop.xlane.xlu0 %995
      %997 = vadd.xlane.f32.xlu0 %v976
      %v998 = vpop.xlane.xlu0 %997
      %999 = vadd.xlane.f32.xlu0 %v977
      %v1000 = vpop.xlane.xlu0 %999
      %1001 = vadd.xlane.f32.xlu0 %v978
      %v1002 = vpop.xlane.xlu0 %1001
      %1003 = vadd.xlane.f32.xlu0 %v979
      %v1004 = vpop.xlane.xlu0 %1003
      %1005 = vadd.xlane.f32.xlu0 %v980
      %v1006 = vpop.xlane.xlu0 %1005
      %1007 = vadd.xlane.f32.xlu0 %v981
      %v1008 = vpop.xlane.xlu0 %1007
      %1009 = vadd.xlane.f32.xlu0 %v982
      %v1010 = vpop.xlane.xlu0 %1009
      %1011 = vadd.xlane.f32.xlu0 %v983
      %v1012 = vpop.xlane.xlu0 %1011
      %1013 = vadd.xlane.f32.xlu0 %v984
      %v1014 = vpop.xlane.xlu0 %1013
      %1015 = vadd.xlane.f32.xlu0 %v985
      %v1016 = vpop.xlane.xlu0 %1015
      %1017 = vadd.xlane.f32.xlu0 %v986
      %v1018 = vpop.xlane.xlu0 %1017
      %vm1019 = vcmask 7168
      %1020 = vst.msk [vmem:[%s5] sm:$0xff] %vm1019, %v988
      %1021 = vst.msk [vmem:[%s5 + $0x8] sm:$0xff] %vm1019, %v990
      %1022 = vst.msk [vmem:[%s5 + $0x10] sm:$0xff] %vm1019, %v992
      %1023 = vst.msk [vmem:[%s5 + $0x18] sm:$0xff] %vm1019, %v994
      %1024 = vst.msk [vmem:[%s5 + $0x20] sm:$0xff] %vm1019, %v996
      %1025 = vst.msk [vmem:[%s5 + $0x28] sm:$0xff] %vm1019, %v998
      %1026 = vst.msk [vmem:[%s5 + $0x30] sm:$0xff] %vm1019, %v1000
      %1027 = vst.msk [vmem:[%s5 + $0x38] sm:$0xff] %vm1019, %v1002
      %1028 = vst.msk [vmem:[%s5 + $0x40] sm:$0xff] %vm1019, %v1004
      %1029 = vst.msk [vmem:[%s5 + $0x48] sm:$0xff] %vm1019, %v1006
      %1030 = vst.msk [vmem:[%s5 + $0x50] sm:$0xff] %vm1019, %v1008
      %1031 = vst.msk [vmem:[%s5 + $0x58] sm:$0xff] %vm1019, %v1010
      %1032 = vst.msk [vmem:[%s5 + $0x60] sm:$0xff] %vm1019, %v1012
      %1033 = vst.msk [vmem:[%s5 + $0x68] sm:$0xff] %vm1019, %v1014
      %1034 = vst.msk [vmem:[%s5 + $0x70] sm:$0xff] %vm1019, %v1016
      %1035 = vst.msk [vmem:[%s5 + $0x78] sm:$0xff] %vm1019, %v1018
      %v1036 = vld [vmem:[#allocation3] sm:$0xff]
      %v1037 = vld [vmem:[#allocation3 + $0x8] sm:$0xff]
      %v1038 = vld [vmem:[#allocation3 + $0x10] sm:$0xff]
      %v1039 = vld [vmem:[#allocation3 + $0x18] sm:$0xff]
      %v1040 = vld [vmem:[#allocation3 + $0x20] sm:$0xff]
      %v1041 = vld [vmem:[#allocation3 + $0x28] sm:$0xff]
      %v1042 = vld [vmem:[#allocation3 + $0x30] sm:$0xff]
      %v1043 = vld [vmem:[#allocation3 + $0x38] sm:$0xff]
      %v1044 = vld [vmem:[#allocation3 + $0x40] sm:$0xff]
      %v1045 = vld [vmem:[#allocation3 + $0x48] sm:$0xff]
      %v1046 = vld [vmem:[#allocation3 + $0x50] sm:$0xff]
      %v1047 = vld [vmem:[#allocation3 + $0x58] sm:$0xff]
      %v1048 = vld [vmem:[#allocation3 + $0x60] sm:$0xff]
      %v1049 = vld [vmem:[#allocation3 + $0x68] sm:$0xff]
      %v1050 = vld [vmem:[#allocation3 + $0x70] sm:$0xff]
      %v1051 = vld [vmem:[#allocation3 + $0x78] sm:$0xff]
      %1052 = vadd.xlane.f32.xlu0 %v1036
      %v1053 = vpop.xlane.xlu0 %1052
      %1054 = vadd.xlane.f32.xlu0 %v1037
      %v1055 = vpop.xlane.xlu0 %1054
      %1056 = vadd.xlane.f32.xlu0 %v1038
      %v1057 = vpop.xlane.xlu0 %1056
      %1058 = vadd.xlane.f32.xlu0 %v1039
      %v1059 = vpop.xlane.xlu0 %1058
      %1060 = vadd.xlane.f32.xlu0 %v1040
      %v1061 = vpop.xlane.xlu0 %1060
      %1062 = vadd.xlane.f32.xlu0 %v1041
      %v1063 = vpop.xlane.xlu0 %1062
      %1064 = vadd.xlane.f32.xlu0 %v1042
      %v1065 = vpop.xlane.xlu0 %1064
      %1066 = vadd.xlane.f32.xlu0 %v1043
      %v1067 = vpop.xlane.xlu0 %1066
      %1068 = vadd.xlane.f32.xlu0 %v1044
      %v1069 = vpop.xlane.xlu0 %1068
      %1070 = vadd.xlane.f32.xlu0 %v1045
      %v1071 = vpop.xlane.xlu0 %1070
      %1072 = vadd.xlane.f32.xlu0 %v1046
      %v1073 = vpop.xlane.xlu0 %1072
      %1074 = vadd.xlane.f32.xlu0 %v1047
      %v1075 = vpop.xlane.xlu0 %1074
      %1076 = vadd.xlane.f32.xlu0 %v1048
      %v1077 = vpop.xlane.xlu0 %1076
      %1078 = vadd.xlane.f32.xlu0 %v1049
      %v1079 = vpop.xlane.xlu0 %1078
      %1080 = vadd.xlane.f32.xlu0 %v1050
      %v1081 = vpop.xlane.xlu0 %1080
      %1082 = vadd.xlane.f32.xlu0 %v1051
      %v1083 = vpop.xlane.xlu0 %1082
      %1084 = vst.msk [vmem:[%s6] sm:$0xff] %vm1019, %v1053
      %1085 = vst.msk [vmem:[%s6 + $0x8] sm:$0xff] %vm1019, %v1055
      %1086 = vst.msk [vmem:[%s6 + $0x10] sm:$0xff] %vm1019, %v1057
      %1087 = vst.msk [vmem:[%s6 + $0x18] sm:$0xff] %vm1019, %v1059
      %1088 = vst.msk [vmem:[%s6 + $0x20] sm:$0xff] %vm1019, %v1061
      %1089 = vst.msk [vmem:[%s6 + $0x28] sm:$0xff] %vm1019, %v1063
      %1090 = vst.msk [vmem:[%s6 + $0x30] sm:$0xff] %vm1019, %v1065
      %1091 = vst.msk [vmem:[%s6 + $0x38] sm:$0xff] %vm1019, %v1067
      %1092 = vst.msk [vmem:[%s6 + $0x40] sm:$0xff] %vm1019, %v1069
      %1093 = vst.msk [vmem:[%s6 + $0x48] sm:$0xff] %vm1019, %v1071
      %1094 = vst.msk [vmem:[%s6 + $0x50] sm:$0xff] %vm1019, %v1073
      %1095 = vst.msk [vmem:[%s6 + $0x58] sm:$0xff] %vm1019, %v1075
      %1096 = vst.msk [vmem:[%s6 + $0x60] sm:$0xff] %vm1019, %v1077
      %1097 = vst.msk [vmem:[%s6 + $0x68] sm:$0xff] %vm1019, %v1079
      %1098 = vst.msk [vmem:[%s6 + $0x70] sm:$0xff] %vm1019, %v1081
      %1099 = vst.msk [vmem:[%s6 + $0x78] sm:$0xff] %vm1019, %v1083
      %v1100 = vld [vmem:[#allocation4] sm:$0xff]
      %v1101 = vld [vmem:[#allocation4 + $0x8] sm:$0xff]
      %v1102 = vld [vmem:[#allocation4 + $0x10] sm:$0xff]
      %v1103 = vld [vmem:[#allocation4 + $0x18] sm:$0xff]
      %v1104 = vld [vmem:[#allocation4 + $0x20] sm:$0xff]
      %v1105 = vld [vmem:[#allocation4 + $0x28] sm:$0xff]
      %v1106 = vld [vmem:[#allocation4 + $0x30] sm:$0xff]
      %v1107 = vld [vmem:[#allocation4 + $0x38] sm:$0xff]
      %v1108 = vld [vmem:[#allocation4 + $0x40] sm:$0xff]
      %v1109 = vld [vmem:[#allocation4 + $0x48] sm:$0xff]
      %v1110 = vld [vmem:[#allocation4 + $0x50] sm:$0xff]
      %v1111 = vld [vmem:[#allocation4 + $0x58] sm:$0xff]
      %v1112 = vld [vmem:[#allocation4 + $0x60] sm:$0xff]
      %v1113 = vld [vmem:[#allocation4 + $0x68] sm:$0xff]
      %v1114 = vld [vmem:[#allocation4 + $0x70] sm:$0xff]
      %v1115 = vld [vmem:[#allocation4 + $0x78] sm:$0xff]
      %1116 = vadd.xlane.f32.xlu0 %v1100
      %v1117 = vpop.xlane.xlu0 %1116
      %1118 = vadd.xlane.f32.xlu0 %v1101
      %v1119 = vpop.xlane.xlu0 %1118
      %1120 = vadd.xlane.f32.xlu0 %v1102
      %v1121 = vpop.xlane.xlu0 %1120
      %1122 = vadd.xlane.f32.xlu0 %v1103
      %v1123 = vpop.xlane.xlu0 %1122
      %1124 = vadd.xlane.f32.xlu0 %v1104
      %v1125 = vpop.xlane.xlu0 %1124
      %1126 = vadd.xlane.f32.xlu0 %v1105
      %v1127 = vpop.xlane.xlu0 %1126
      %1128 = vadd.xlane.f32.xlu0 %v1106
      %v1129 = vpop.xlane.xlu0 %1128
      %1130 = vadd.xlane.f32.xlu0 %v1107
      %v1131 = vpop.xlane.xlu0 %1130
      %1132 = vadd.xlane.f32.xlu0 %v1108
      %v1133 = vpop.xlane.xlu0 %1132
      %1134 = vadd.xlane.f32.xlu0 %v1109
      %v1135 = vpop.xlane.xlu0 %1134
      %1136 = vadd.xlane.f32.xlu0 %v1110
      %v1137 = vpop.xlane.xlu0 %1136
      %1138 = vadd.xlane.f32.xlu0 %v1111
      %v1139 = vpop.xlane.xlu0 %1138
      %1140 = vadd.xlane.f32.xlu0 %v1112
      %v1141 = vpop.xlane.xlu0 %1140
      %1142 = vadd.xlane.f32.xlu0 %v1113
      %v1143 = vpop.xlane.xlu0 %1142
      %1144 = vadd.xlane.f32.xlu0 %v1114
      %v1145 = vpop.xlane.xlu0 %1144
      %1146 = vadd.xlane.f32.xlu0 %v1115
      %v1147 = vpop.xlane.xlu0 %1146
      %1148 = vst.msk [vmem:[%s7] sm:$0xff] %vm1019, %v1117
      %1149 = vst.msk [vmem:[%s7 + $0x8] sm:$0xff] %vm1019, %v1119
      %1150 = vst.msk [vmem:[%s7 + $0x10] sm:$0xff] %vm1019, %v1121
      %1151 = vst.msk [vmem:[%s7 + $0x18] sm:$0xff] %vm1019, %v1123
      %1152 = vst.msk [vmem:[%s7 + $0x20] sm:$0xff] %vm1019, %v1125
      %1153 = vst.msk [vmem:[%s7 + $0x28] sm:$0xff] %vm1019, %v1127
      %1154 = vst.msk [vmem:[%s7 + $0x30] sm:$0xff] %vm1019, %v1129
      %1155 = vst.msk [vmem:[%s7 + $0x38] sm:$0xff] %vm1019, %v1131
      %1156 = vst.msk [vmem:[%s7 + $0x40] sm:$0xff] %vm1019, %v1133
      %1157 = vst.msk [vmem:[%s7 + $0x48] sm:$0xff] %vm1019, %v1135
      %1158 = vst.msk [vmem:[%s7 + $0x50] sm:$0xff] %vm1019, %v1137
      %1159 = vst.msk [vmem:[%s7 + $0x58] sm:$0xff] %vm1019, %v1139
      %1160 = vst.msk [vmem:[%s7 + $0x60] sm:$0xff] %vm1019, %v1141
      %1161 = vst.msk [vmem:[%s7 + $0x68] sm:$0xff] %vm1019, %v1143
      %1162 = vst.msk [vmem:[%s7 + $0x70] sm:$0xff] %vm1019, %v1145
      %1163 = vst.msk [vmem:[%s7 + $0x78] sm:$0xff] %vm1019, %v1147
    $region37: #{_lambda_.3} parent=1 // pred_fallthru
      _
    // Predicated region
    $region38: #{_lambda_.3} parent=1 // pred_check
      _
    $region39: #{_lambda_.3} parent=1 // pred_check_branch
      %1165 = sbr.rel (0) target = $region41
    $region40: #{_lambda_.3} parent=1 // pred_region
      _
    $region41: #{_lambda_.3} parent=1 // pred_fallthru
      _
    // Predicated region
    $region42: #{_lambda_.3} parent=1 // pred_check
      _
    $region43: #{_lambda_.3} parent=1 // pred_check_branch
      %1167 = sbr.rel (0) target = $region45
    $region44: #{_lambda_.3} parent=1 // pred_region
      _
    $region45: #{_lambda_.3} parent=1 // pred_fallthru
      _
    // Predicated region
    $region46: #{_lambda_.3} parent=1 // pred_check
      _
    $region47: #{_lambda_.3} parent=1 // pred_check_branch
      %1169 = sbr.rel (0) target = $region49
    $region48: #{_lambda_.3} parent=1 // pred_region
      _
    $region49: #{_lambda_.3} parent=1 // pred_fallthru
      _
    // Predicated region
    $region50: #{_lambda_.3} parent=1 // pred_check
      _
    $region51: #{_lambda_.3} parent=1 // pred_check_branch
      %1171 = sbr.rel (0) target = $region53
    $region52: #{_lambda_.3} parent=1 // pred_region
      _
    $region53: #{_lambda_.3} parent=1 // pred_fallthru
      _
    // Predicated region
    $region54: #{_lambda_.3} parent=1 // pred_check
      _
    $region55: #{_lambda_.3} parent=1 // pred_check_branch
      %1173 = sbr.rel (0) target = $region57
    $region56: #{_lambda_.3} parent=1 // pred_region
      _
    $region57: #{_lambda_.3} parent=1 // pred_fallthru
      _
    // Predicated region
    $region58: #{_lambda_.3} parent=1 // pred_check
      _
    $region59: #{_lambda_.3} parent=1 // pred_check_branch
      %1175 = sbr.rel (0) target = $region61
    $region60: #{_lambda_.3} parent=1 // pred_region
      _
    $region61: #{_lambda_.3} parent=1 // pred_fallthru
      _
    %1176 = vsyncpa [#allocation8], 1
    %1177 = vsyncpa [#allocation10], 1

</llo_original>
